<compile_context>
chip_gen: v6e
topology: v6e:2x2x1
jax: 0.10.0
libtpu: 0.0.40
codegen_flags: <defaults>
</compile_context>

<pallas_src>
import jax
import jax.numpy as jnp
from jax.experimental import pallas as pl
from jax.experimental.pallas import tpu as pltpu


def _frelu_kernel(p_ref, x_ref, o_ref):
    # p_ref : (16, C_blk) f32 VMEM.  rows 0..8: BN-scaled 3x3 taps (row-major),
    #         row 9: folded additive term b, rows 10..15: padding.
    # x_ref / o_ref : (H, W, C_blk) block of the NHWC tensor (N squeezed).
    x = x_ref[...].astype(jnp.float32)
    H, W, C = x.shape

    # Zero-pad the spatial plane in-register (padding=1); no VMEM scratch.
    zh = jnp.zeros((1, W, C), jnp.float32)
    xp = jnp.concatenate([zh, x, zh], axis=0)          # (H+2, W,   C)
    zw = jnp.zeros((H + 2, 1, C), jnp.float32)
    xp = jnp.concatenate([zw, xp, zw], axis=1)         # (H+2, W+2, C)

    # Depthwise 3x3 conv via 9 shifted taps; weights are (C,) lane vectors.
    acc = jnp.zeros((H, W, C), jnp.float32)
    for dh in range(3):
        for dw in range(3):
            w = p_ref[dh * 3 + dw, :]                  # (C,)
            acc = acc + xp[dh:dh + H, dw:dw + W, :] * w[None, None, :]

    b = p_ref[9, :][None, None, :]
    tx = acc + b                                       # conv*BN fully folded
    o_ref[...] = jnp.maximum(x, tx).astype(o_ref.dtype)


def _pick_c_block(C, H, W):
    # Target ~2 MiB of f32 working plane per block: large enough to amortize
    # per-step overhead, small enough that the f32 intermediates plus the
    # double-buffered I/O blocks fit scoped VMEM on v5e/v6e and v7x (64 MiB).
    target_elems = (2 * 1024 * 1024) // 4
    cb = max(1, target_elems // (H * W))
    if cb >= C:
        return C
    return max(128, (cb // 128) * 128)   # multiple of 128 -> lane-dense blocks


def frelu_pallas(x, conv_w, conv_b, gamma, beta, running_mean, running_var,
                 eps=1e-5):
    """x: (N, C, H, W).  conv_w: (C, 1, 3, 3).  conv_b/gamma/beta/stats: (C,)."""
    N, C, H, W = x.shape

    # Fold conv bias + eval-mode BN:  tx = sum_k (w_k * a) . shift_k(x) + b
    a = (gamma / jnp.sqrt(running_var + eps)).astype(jnp.float32)        # (C,)
    b = ((conv_b - running_mean) * a + beta).astype(jnp.float32)         # (C,)
    taps = conv_w.reshape(C, 9).astype(jnp.float32).T * a[None, :]       # (9, C)
    params = jnp.concatenate(
        [taps, b[None, :], jnp.zeros((6, C), jnp.float32)], axis=0)      # (16, C)

    # Channels-last so C sits on the lane axis (layout plumbing only).
    x_nhwc = jnp.transpose(x, (0, 2, 3, 1))                              # (N, H, W, C)

    c_blk = _pick_c_block(C, H, W)
    grid = (N, pl.cdiv(C, c_blk))

    # VMEM budget: double-buffered I/O blocks + in-kernel f32 intermediates.
    io_blk = H * W * c_blk * x.dtype.itemsize
    f32_plane = H * W * c_blk * 4
    vmem_need = 4 * io_blk + 6 * f32_plane + 2 * 16 * c_blk * 4 + (2 << 20)
    vmem_limit = int(min(max(vmem_need, 32 << 20), 48 << 20))

    out_nhwc = pl.pallas_call(
        _frelu_kernel,
        out_shape=jax.ShapeDtypeStruct((N, H, W, C), x.dtype),
        grid_spec=pltpu.PrefetchScalarGridSpec(
            num_scalar_prefetch=0,
            grid=grid,
            in_specs=[
                pl.BlockSpec((16, c_blk), lambda n, c: (0, c)),
                pl.BlockSpec((None, H, W, c_blk), lambda n, c: (n, 0, 0, c)),
            ],
            out_specs=pl.BlockSpec((None, H, W, c_blk),
                                   lambda n, c: (n, 0, 0, c)),
        ),
        compiler_params=pltpu.CompilerParams(
            dimension_semantics=("parallel", "parallel"),
            vmem_limit_bytes=vmem_limit),
    )(params, x_nhwc)

    return jnp.transpose(out_nhwc, (0, 3, 1, 2))                         # NCHW


def frelu_ref(x, conv_w, conv_b, gamma, beta, mean, var, eps=1e-5):
    """Pure-JAX reference (lax depthwise conv + eval BN + max)."""
    N, C, H, W = x.shape
    z = jax.lax.conv_general_dilated(
        x, conv_w,  # (C, 1, 3, 3) OIHW with feature_group_count=C
        window_strides=(1, 1), padding=((1, 1), (1, 1)),
        dimension_numbers=('NCHW', 'OIHW', 'NCHW'),
        feature_group_count=C)
    z = z + conv_b[None, :, None, None]
    inv = (gamma / jnp.sqrt(var + eps))[None, :, None, None]
    tx = (z - mean[None, :, None, None]) * inv + beta[None, :, None, None]
    return jnp.maximum(x, tx)


if __name__ == "__main__":
    N, C, H, W = 2, 4, 16, 16
    key = jax.random.PRNGKey(0)
    kx, kw, kb = jax.random.split(key, 3)

    x = jax.random.normal(kx, (N, C, H, W), dtype=jnp.float32)
    # Shapes from nn.Conv2d(C, C, 3, 1, 1, groups=C) and nn.BatchNorm2d(C):
    conv_w = jax.random.normal(kw, (C, 1, 3, 3), dtype=jnp.float32) * 0.1
    conv_b = jax.random.normal(kb, (C,), dtype=jnp.float32) * 0.1
    gamma = jnp.ones((C,), jnp.float32)
    beta = jnp.zeros((C,), jnp.float32)
    running_mean = jnp.zeros((C,), jnp.float32)
    running_var = jnp.ones((C,), jnp.float32)

    out = frelu_pallas(x, conv_w, conv_b, gamma, beta, running_mean, running_var)
    out = jax.block_until_ready(out)

    ref = frelu_ref(x, conv_w, conv_b, gamma, beta, running_mean, running_var)
    assert out.shape == (N, C, H, W)
    assert jnp.allclose(out, ref, rtol=1e-4, atol=1e-4), "mismatch vs reference"

    print("KERNEL_OK")
</pallas_src>

<mosaic_0001>
module attributes {stable_mosaic.version = 11 : i64} {
  func.func @_frelu_kernel(%arg0: i32, %arg1: i32, %arg2: memref<16x4xf32, #tpu.memory_space<vmem>>, %arg3: memref<1x16x16x4xf32, #tpu.memory_space<vmem>>, %arg4: memref<1x16x16x4xf32, #tpu.memory_space<vmem>>) attributes {dimension_semantics = [#tpu.dimension_semantics<parallel>, #tpu.dimension_semantics<parallel>], iteration_bounds = array<i64: 2, 1>, scalar_prefetch = 0 : i64, scratch_operands = 0 : i64, tpu.core_type = #tpu.core_type<tc>, window_params = [{transform_indices = @transform_0, window_bounds = array<i64: 16, 4>}, {transform_indices = @transform_1, window_bounds = array<i64: 1, 16, 16, 4>}, {transform_indices = @transform_2, window_bounds = array<i64: 1, 16, 16, 4>}]} {
    %c0 = arith.constant 0 : index
    %c0_0 = arith.constant 0 : index
    %c0_1 = arith.constant 0 : index
    %c0_2 = arith.constant 0 : index
    %0 = vector.load %arg3[%c0, %c0_0, %c0_1, %c0_2] : memref<1x16x16x4xf32, #tpu.memory_space<vmem>>, vector<1x16x16x4xf32>
    %1 = vector.shape_cast %0 : vector<1x16x16x4xf32> to vector<16x16x4xf32>
    %cst = arith.constant 0.000000e+00 : f32
    %2 = vector.broadcast %cst : f32 to vector<1x16x4xf32>
    %3 = tpu.concatenate %2, %1, %2 in 0 : vector<1x16x4xf32>, vector<16x16x4xf32>, vector<1x16x4xf32> -> vector<18x16x4xf32>
    %cst_3 = arith.constant 0.000000e+00 : f32
    %4 = vector.broadcast %cst_3 : f32 to vector<18x1x4xf32>
    %5 = tpu.concatenate %4, %3, %4 in 1 : vector<18x1x4xf32>, vector<18x16x4xf32>, vector<18x1x4xf32> -> vector<18x18x4xf32>
    %cst_4 = arith.constant 0.000000e+00 : f32
    %6 = vector.broadcast %cst_4 : f32 to vector<16x16x4xf32>
    %c0_5 = arith.constant 0 : index
    %c0_6 = arith.constant 0 : index
    %7 = vector.load %arg2[%c0_5, %c0_6] : memref<16x4xf32, #tpu.memory_space<vmem>>, vector<1x4xf32>
    %8 = vector.shape_cast %7 : vector<1x4xf32> to vector<4xf32>
    %9 = vector.extract_strided_slice %5 {offsets = [0, 0, 0], sizes = [16, 16, 4], strides = [1, 1, 1]} : vector<18x18x4xf32> to vector<16x16x4xf32>
    %10 = vector.shape_cast %8 : vector<4xf32> to vector<1x1x4xf32>
    %11 = vector.broadcast %10 : vector<1x1x4xf32> to vector<16x16x4xf32>
    %12 = arith.mulf %9, %11 : vector<16x16x4xf32>
    %13 = arith.addf %6, %12 : vector<16x16x4xf32>
    %c1 = arith.constant 1 : index
    %c0_7 = arith.constant 0 : index
    %14 = vector.load %arg2[%c1, %c0_7] : memref<16x4xf32, #tpu.memory_space<vmem>>, vector<1x4xf32>
    %15 = vector.shape_cast %14 : vector<1x4xf32> to vector<4xf32>
    %16 = vector.extract_strided_slice %5 {offsets = [0, 1, 0], sizes = [16, 16, 4], strides = [1, 1, 1]} : vector<18x18x4xf32> to vector<16x16x4xf32>
    %17 = vector.shape_cast %15 : vector<4xf32> to vector<1x1x4xf32>
    %18 = vector.broadcast %17 : vector<1x1x4xf32> to vector<16x16x4xf32>
    %19 = arith.mulf %16, %18 : vector<16x16x4xf32>
    %20 = arith.addf %13, %19 : vector<16x16x4xf32>
    %c2 = arith.constant 2 : index
    %c0_8 = arith.constant 0 : index
    %21 = vector.load %arg2[%c2, %c0_8] : memref<16x4xf32, #tpu.memory_space<vmem>>, vector<1x4xf32>
    %22 = vector.shape_cast %21 : vector<1x4xf32> to vector<4xf32>
    %23 = vector.extract_strided_slice %5 {offsets = [0, 2, 0], sizes = [16, 16, 4], strides = [1, 1, 1]} : vector<18x18x4xf32> to vector<16x16x4xf32>
    %24 = vector.shape_cast %22 : vector<4xf32> to vector<1x1x4xf32>
    %25 = vector.broadcast %24 : vector<1x1x4xf32> to vector<16x16x4xf32>
    %26 = arith.mulf %23, %25 : vector<16x16x4xf32>
    %27 = arith.addf %20, %26 : vector<16x16x4xf32>
    %c3 = arith.constant 3 : index
    %c0_9 = arith.constant 0 : index
    %28 = vector.load %arg2[%c3, %c0_9] : memref<16x4xf32, #tpu.memory_space<vmem>>, vector<1x4xf32>
    %29 = vector.shape_cast %28 : vector<1x4xf32> to vector<4xf32>
    %30 = vector.extract_strided_slice %5 {offsets = [1, 0, 0], sizes = [16, 16, 4], strides = [1, 1, 1]} : vector<18x18x4xf32> to vector<16x16x4xf32>
    %31 = vector.shape_cast %29 : vector<4xf32> to vector<1x1x4xf32>
    %32 = vector.broadcast %31 : vector<1x1x4xf32> to vector<16x16x4xf32>
    %33 = arith.mulf %30, %32 : vector<16x16x4xf32>
    %34 = arith.addf %27, %33 : vector<16x16x4xf32>
    %c4 = arith.constant 4 : index
    %c0_10 = arith.constant 0 : index
    %35 = vector.load %arg2[%c4, %c0_10] : memref<16x4xf32, #tpu.memory_space<vmem>>, vector<1x4xf32>
    %36 = vector.shape_cast %35 : vector<1x4xf32> to vector<4xf32>
    %37 = vector.extract_strided_slice %5 {offsets = [1, 1, 0], sizes = [16, 16, 4], strides = [1, 1, 1]} : vector<18x18x4xf32> to vector<16x16x4xf32>
    %38 = vector.shape_cast %36 : vector<4xf32> to vector<1x1x4xf32>
    %39 = vector.broadcast %38 : vector<1x1x4xf32> to vector<16x16x4xf32>
    %40 = arith.mulf %37, %39 : vector<16x16x4xf32>
    %41 = arith.addf %34, %40 : vector<16x16x4xf32>
    %c5 = arith.constant 5 : index
    %c0_11 = arith.constant 0 : index
    %42 = vector.load %arg2[%c5, %c0_11] : memref<16x4xf32, #tpu.memory_space<vmem>>, vector<1x4xf32>
    %43 = vector.shape_cast %42 : vector<1x4xf32> to vector<4xf32>
    %44 = vector.extract_strided_slice %5 {offsets = [1, 2, 0], sizes = [16, 16, 4], strides = [1, 1, 1]} : vector<18x18x4xf32> to vector<16x16x4xf32>
    %45 = vector.shape_cast %43 : vector<4xf32> to vector<1x1x4xf32>
    %46 = vector.broadcast %45 : vector<1x1x4xf32> to vector<16x16x4xf32>
    %47 = arith.mulf %44, %46 : vector<16x16x4xf32>
    %48 = arith.addf %41, %47 : vector<16x16x4xf32>
    %c6 = arith.constant 6 : index
    %c0_12 = arith.constant 0 : index
    %49 = vector.load %arg2[%c6, %c0_12] : memref<16x4xf32, #tpu.memory_space<vmem>>, vector<1x4xf32>
    %50 = vector.shape_cast %49 : vector<1x4xf32> to vector<4xf32>
    %51 = vector.extract_strided_slice %5 {offsets = [2, 0, 0], sizes = [16, 16, 4], strides = [1, 1, 1]} : vector<18x18x4xf32> to vector<16x16x4xf32>
    %52 = vector.shape_cast %50 : vector<4xf32> to vector<1x1x4xf32>
    %53 = vector.broadcast %52 : vector<1x1x4xf32> to vector<16x16x4xf32>
    %54 = arith.mulf %51, %53 : vector<16x16x4xf32>
    %55 = arith.addf %48, %54 : vector<16x16x4xf32>
    %c7 = arith.constant 7 : index
    %c0_13 = arith.constant 0 : index
    %56 = vector.load %arg2[%c7, %c0_13] : memref<16x4xf32, #tpu.memory_space<vmem>>, vector<1x4xf32>
    %57 = vector.shape_cast %56 : vector<1x4xf32> to vector<4xf32>
    %58 = vector.extract_strided_slice %5 {offsets = [2, 1, 0], sizes = [16, 16, 4], strides = [1, 1, 1]} : vector<18x18x4xf32> to vector<16x16x4xf32>
    %59 = vector.shape_cast %57 : vector<4xf32> to vector<1x1x4xf32>
    %60 = vector.broadcast %59 : vector<1x1x4xf32> to vector<16x16x4xf32>
    %61 = arith.mulf %58, %60 : vector<16x16x4xf32>
    %62 = arith.addf %55, %61 : vector<16x16x4xf32>
    %c8 = arith.constant 8 : index
    %c0_14 = arith.constant 0 : index
    %63 = vector.load %arg2[%c8, %c0_14] : memref<16x4xf32, #tpu.memory_space<vmem>>, vector<1x4xf32>
    %64 = vector.shape_cast %63 : vector<1x4xf32> to vector<4xf32>
    %65 = vector.extract_strided_slice %5 {offsets = [2, 2, 0], sizes = [16, 16, 4], strides = [1, 1, 1]} : vector<18x18x4xf32> to vector<16x16x4xf32>
    %66 = vector.shape_cast %64 : vector<4xf32> to vector<1x1x4xf32>
    %67 = vector.broadcast %66 : vector<1x1x4xf32> to vector<16x16x4xf32>
    %68 = arith.mulf %65, %67 : vector<16x16x4xf32>
    %69 = arith.addf %62, %68 : vector<16x16x4xf32>
    %c9 = arith.constant 9 : index
    %c0_15 = arith.constant 0 : index
    %70 = vector.load %arg2[%c9, %c0_15] : memref<16x4xf32, #tpu.memory_space<vmem>>, vector<1x4xf32>
    %71 = vector.shape_cast %70 : vector<1x4xf32> to vector<4xf32>
    %72 = vector.shape_cast %71 : vector<4xf32> to vector<1x1x4xf32>
    %73 = vector.broadcast %72 : vector<1x1x4xf32> to vector<16x16x4xf32>
    %74 = arith.addf %69, %73 : vector<16x16x4xf32>
    %75 = arith.maximumf %1, %74 : vector<16x16x4xf32>
    %c0_16 = arith.constant 0 : index
    %c0_17 = arith.constant 0 : index
    %c0_18 = arith.constant 0 : index
    %c0_19 = arith.constant 0 : index
    %76 = vector.load %arg4[%c0_16, %c0_17, %c0_18, %c0_19] : memref<1x16x16x4xf32, #tpu.memory_space<vmem>>, vector<1x16x16x4xf32>
    %77 = vector.shape_cast %76 : vector<1x16x16x4xf32> to vector<16x16x4xf32>
    %78 = vector.shape_cast %75 : vector<16x16x4xf32> to vector<1x16x16x4xf32>
    tpu.vector_store %arg4[%c0_16, %c0_17, %c0_18, %c0_19], %78 {strides = array<i32>} : memref<1x16x16x4xf32, #tpu.memory_space<vmem>>, vector<1x16x16x4xf32>,
    return
  }
  func.func @transform_0(%arg0: i32, %arg1: i32) -> (i32, i32) {
    %c0_i32 = arith.constant 0 : i32
    %c0_i32_0 = arith.constant 0 : i32
    return %c0_i32, %arg1 : i32, i32
  }
  func.func @transform_1(%arg0: i32, %arg1: i32) -> (i32, i32, i32, i32) {
    %c0_i32 = arith.constant 0 : i32
    %c0_i32_0 = arith.constant 0 : i32
    %c0_i32_1 = arith.constant 0 : i32
    return %arg0, %c0_i32, %c0_i32_0, %arg1 : i32, i32, i32, i32
  }
  func.func @transform_2(%arg0: i32, %arg1: i32) -> (i32, i32, i32, i32) {
    %c0_i32 = arith.constant 0 : i32
    %c0_i32_0 = arith.constant 0 : i32
    %c0_i32_1 = arith.constant 0 : i32
    return %arg0, %c0_i32, %c0_i32_0, %arg1 : i32, i32, i32, i32
  }
}

</mosaic_0001>

<llo_original>
// kernel: tpu_custom_call.1
$region0: #{tpu_custom_call.1}
  #allocation0 [shape = 'u32[]', space=smem, size = 0x4, offset = 0x4, fixed_abs, tag = 'smem constant byte address 0x4 - core index']
  #allocation1 [shape = 'u32[144,128]{1,0:T(1,128)}', space=vmem, size = 0x12000, scoped, tag = 'internal scratch']
  %s0 = inlined_call_operand.vmem [shape: f32[16,4], index: 0, kind: input, shape index: {}]
  %s1 = inlined_call_operand.vmem [shape: f32[2,16,16,4], index: 1, kind: input, shape index: {}]
  %s2 = inlined_call_operand.vmem [shape: f32[2,16,16,4], index: 2, kind: output, shape index: {}]
  %s3 = sld [smem:[#allocation0]]
  $region41: #{tpu_custom_call.1} parent=0
    _
  %s5 = ssub.s32 1, %s3
  %s6 = scalar_select 0, %s5, %s3
  loop: start=0, step=1, limit=4
  $region2: #{tpu_custom_call.1} parent=0 // loop_pre_header
    _
  $region3: #{tpu_custom_call.1} parent=0 // loop_header
    %s8 = sphi 0, %s12
    %p9 = scmp.ge.s32.totalorder %s8, 4
    %s15 = sphi 0, %s27
    %s16 = sphi 0, %s23
    %s17 = sphi 0, %s15
    %s18 = sphi 0, %s16
    %s19 = sphi 0, %s17
    %s20 = sphi 0, %s18
    %s30 = sphi 0, %s32
    %s33 = sphi 0, %s30
    %s34 = sphi 0, %s33
    %s50 = sphi 0, %s34
    %s58 = sphi 0, %s60
    %s61 = sphi 0, %s58
    %s62 = sphi 0, %s61
    %s78 = sphi 0, %s62
    %s86 = sphi 0, %s88
    %s89 = sphi 0, %s86
    %s90 = sphi 0, %s89
    %s106 = sphi 0, %s90
  $region4: #{tpu_custom_call.1} parent=0 // loop_header_branch
    %11 = sbr.rel (%p9) target = $region8
  $region5: #{tpu_custom_call.1} parent=0 // loop_body
    %s13 = ssub.s32 %s8, 1
    %s14 = ssub.s32 %s8, 2
    %s21 = sadd.s32 1, %s16
    %p22 = scmp.ge.s32.totalorder %s21, 1
    %s23 = scalar_select %p22, 0, %s21
    %s24 = sadd.s32 1, %s15
    %s25 = scalar_select %p22, %s24, %s15
    %p26 = scmp.ge.s32.totalorder %s25, 2
    %s27 = scalar_select %p26, 0, %s25
    %s28 = ssub.s32 %s16, %s23
    %p29 = scmp.eq.s32.totalorder %s28, 0
    %s31 = sadd.s32 %s30, 1
    %s32 = scalar_select %p29, %s30, %s31
    %p35 = pneg %p29
    %p36 = scmp.eq.s32.totalorder %s8, 1
    %p37 = por %p35, %p36
    %p38 = scmp.ne.s32.totalorder %s30, %s33
    %p39 = scmp.eq.s32.totalorder %s8, 0
    %p40 = por %p38, %p39
    %p41 = scmp.ne.s32.totalorder %s30, %s33
    %p42 = scmp.eq.s32.totalorder %s13, 1
    %p43 = por %p41, %p42
    %p44 = scmp.ne.s32.totalorder %s33, %s34
    %p45 = scmp.eq.s32.totalorder %s13, 0
    %p46 = por %p44, %p45
    %p47 = scmp.ne.s32.totalorder %s33, %s34
    %p48 = scmp.eq.s32.totalorder %s14, 1
    %p49 = por %p47, %p48
    %p51 = scmp.ne.s32.totalorder %s34, %s50
    %p52 = scmp.eq.s32.totalorder %s14, 0
    %p53 = por %p51, %p52
    %s54 = ssub.s32 %s15, %s27
    %s55 = ssub.s32 %s16, %s23
    %s56 = sor.u32 %s54, %s55
    %p57 = scmp.eq.s32.totalorder %s56, 0
    %s59 = sadd.s32 %s58, 1
    %s60 = scalar_select %p57, %s58, %s59
    %p63 = pneg %p57
    %p64 = scmp.eq.s32.totalorder %s8, 1
    %p65 = por %p63, %p64
    %p66 = scmp.ne.s32.totalorder %s58, %s61
    %p67 = scmp.eq.s32.totalorder %s8, 0
    %p68 = por %p66, %p67
    %p69 = scmp.ne.s32.totalorder %s58, %s61
    %p70 = scmp.eq.s32.totalorder %s13, 1
    %p71 = por %p69, %p70
    %p72 = scmp.ne.s32.totalorder %s61, %s62
    %p73 = scmp.eq.s32.totalorder %s13, 0
    %p74 = por %p72, %p73
    %p75 = scmp.ne.s32.totalorder %s61, %s62
    %p76 = scmp.eq.s32.totalorder %s14, 1
    %p77 = por %p75, %p76
    %p79 = scmp.ne.s32.totalorder %s62, %s78
    %p80 = scmp.eq.s32.totalorder %s14, 0
    %p81 = por %p79, %p80
    %s82 = ssub.s32 %s15, %s27
    %s83 = ssub.s32 %s16, %s23
    %s84 = sor.u32 %s82, %s83
    %p85 = scmp.eq.s32.totalorder %s84, 0
    %s87 = sadd.s32 %s86, 1
    %s88 = scalar_select %p85, %s86, %s87
    %p91 = pneg %p85
    %p92 = scmp.eq.s32.totalorder %s8, 1
    %p93 = por %p91, %p92
    %p94 = scmp.ne.s32.totalorder %s86, %s89
    %p95 = scmp.eq.s32.totalorder %s8, 0
    %p96 = por %p94, %p95
    %p97 = scmp.ne.s32.totalorder %s86, %s89
    %p98 = scmp.eq.s32.totalorder %s13, 1
    %p99 = por %p97, %p98
    %p100 = scmp.ne.s32.totalorder %s89, %s90
    %p101 = scmp.eq.s32.totalorder %s13, 0
    %p102 = por %p100, %p101
    %p103 = scmp.ne.s32.totalorder %s89, %s90
    %p104 = scmp.eq.s32.totalorder %s14, 1
    %p105 = por %p103, %p104
    %p107 = scmp.ne.s32.totalorder %s90, %s106
    %p108 = scmp.eq.s32.totalorder %s14, 0
    %p109 = por %p107, %p108
    %p110 = scmp.le.s32.totalorder 1, %s8
    %p111 = scmp.lt.s32.totalorder %s8, 3
    %p112 = pnand %p110, %p111
    %p113 = pneg %p112
    // Predicated region
    $region9: #{tpu_custom_call.1} parent=5 // pred_check
      _
    $region10: #{tpu_custom_call.1} parent=5 // pred_check_branch
      %115 = sbr.rel (%p112) target = $region12
    $region11: #{tpu_custom_call.1} parent=5 // pred_region
      %s116 = ssub.s32 %s8, 1
      // Predicated region
      $region13: #{tpu_custom_call.1} parent=11 // pred_check
        %p117 = pneg %p46
      $region14: #{tpu_custom_call.1} parent=11 // pred_check_branch
        %119 = sbr.rel (%p117) target = $region16
      $region15: #{tpu_custom_call.1} parent=11 // pred_region
        %p120 = scmp.lt.s32.totalorder %s18, 0
        %s121 = scalar_select %p120, %s18, 0
        %s122 = smul.addr %s121, 8
        %s123 = scalar_lea.vmem %s0, %s122
      $region16: #{tpu_custom_call.1} parent=11 // pred_fallthru
        _
    $region12: #{tpu_custom_call.1} parent=5 // pred_fallthru
      _
    %p124 = scmp.lt.s32.totalorder %s8, 2
    // Predicated region
    $region17: #{tpu_custom_call.1} parent=5 // pred_check
      %p125 = pneg %p124
    $region18: #{tpu_custom_call.1} parent=5 // pred_check_branch
      %127 = sbr.rel (%p125) target = $region20
    $region19: #{tpu_custom_call.1} parent=5 // pred_region
      // Predicated region
      $region21: #{tpu_custom_call.1} parent=19 // pred_check
        %p128 = pneg %p68
      $region22: #{tpu_custom_call.1} parent=19 // pred_check_branch
        %130 = sbr.rel (%p128) target = $region24
      $region23: #{tpu_custom_call.1} parent=19 // pred_region
        %p131 = scmp.lt.s32.totalorder %s15, 1
        %s132 = scalar_select %p131, %s15, 1
        %p133 = scmp.lt.s32.totalorder %s16, 0
        %s134 = scalar_select %p133, %s16, 0
        %s135 = smul.addr %s132, 32
        %s136 = sadd.s32 %s134, %s135
        %s137 = smul.addr %s136, 8
        %s138 = scalar_lea.vmem %s1, %s137
      $region24: #{tpu_custom_call.1} parent=19 // pred_fallthru
        _
    $region20: #{tpu_custom_call.1} parent=5 // pred_fallthru
      _
    %p139 = scmp.le.s32.totalorder 1, %s8
    %p140 = scmp.lt.s32.totalorder %s8, 3
    %p141 = pnand %p139, %p140
    %p142 = pneg %p141
    // Predicated region
    $region25: #{tpu_custom_call.1} parent=5 // pred_check
      _
    $region26: #{tpu_custom_call.1} parent=5 // pred_check_branch
      %144 = sbr.rel (%p141) target = $region28
    $region27: #{tpu_custom_call.1} parent=5 // pred_region
      %s145 = ssub.s32 %s8, 1
      %p146 = scmp.lt.s32.totalorder %s18, 0
      %s147 = scalar_select %p146, %s18, 0
      %s148 = smul.addr %s147, 8
      %s149 = scalar_lea.vmem %s0, %s148
      %p150 = pneg %p46
      %p151 = pneg %p43
      %p152 = scmp.lt.s32.totalorder %s17, 1
      %s153 = scalar_select %p152, %s17, 1
      %p154 = scmp.lt.s32.totalorder %s18, 0
      %s155 = scalar_select %p154, %s18, 0
      %s156 = smul.addr %s153, 32
      %s157 = sadd.s32 %s155, %s156
      %s158 = smul.addr %s157, 8
      %s159 = scalar_lea.vmem %s1, %s158
      %p160 = pneg %p74
      %p161 = pneg %p71
      %p162 = pneg %p102
      %p163 = pneg %p99
      %p164 = scmp.lt.s32.totalorder %s17, 1
      %s165 = scalar_select %p164, %s17, 1
      %p166 = scmp.lt.s32.totalorder %s18, 0
      %s167 = scalar_select %p166, %s18, 0
      %s168 = smul.addr %s165, 32
      %s169 = sadd.s32 %s167, %s168
      %s170 = smul.addr %s169, 8
      %s171 = scalar_lea.vmem %s2, %s170
      %p172 = scmp.lt.s32.totalorder %s18, 0
      %s173 = scalar_select %p172, %s18, 0
      %s174 = smul.addr %s173, 8
      %s175 = scalar_lea.vmem %s0, %s174
      %p176 = scmp.lt.s32.totalorder %s17, 1
      %s177 = scalar_select %p176, %s17, 1
      %p178 = scmp.lt.s32.totalorder %s18, 0
      %s179 = scalar_select %p178, %s18, 0
      %s180 = smul.addr %s177, 32
      %s181 = sadd.s32 %s179, %s180
      %s182 = smul.addr %s181, 8
      %s183 = scalar_lea.vmem %s1, %s182
      %p184 = scmp.lt.s32.totalorder %s17, 1
      %s185 = scalar_select %p184, %s17, 1
      %p186 = scmp.lt.s32.totalorder %s18, 0
      %s187 = scalar_select %p186, %s18, 0
      %s188 = smul.addr %s185, 32
      %s189 = sadd.s32 %s187, %s188
      %s190 = smul.addr %s189, 8
      %s191 = scalar_lea.vmem %s2, %s190
      %v192 = vld [vmem:[%s183] sm:$0xff]
      %v193 = vld [vmem:[%s183 + $0x8] sm:$0xff]
      %v194 = vld [vmem:[%s183 + $0x10] sm:$0xff]
      %v195 = vld [vmem:[%s183 + $0x18] sm:$0xff]
      %v196 = vld [vmem:[%s183 + $0x20] sm:$0xff]
      %v197 = vld [vmem:[%s183 + $0x28] sm:$0xff]
      %v198 = vld [vmem:[%s183 + $0x30] sm:$0xff]
      %v199 = vld [vmem:[%s183 + $0x38] sm:$0xff]
      %v200 = vld [vmem:[%s183 + $0x40] sm:$0xff]
      %v201 = vld [vmem:[%s183 + $0x48] sm:$0xff]
      %v202 = vld [vmem:[%s183 + $0x50] sm:$0xff]
      %v203 = vld [vmem:[%s183 + $0x58] sm:$0xff]
      %v204 = vld [vmem:[%s183 + $0x60] sm:$0xff]
      %v205 = vld [vmem:[%s183 + $0x68] sm:$0xff]
      %v206 = vld [vmem:[%s183 + $0x70] sm:$0xff]
      %v207 = vld [vmem:[%s183 + $0x78] sm:$0xff]
      %v208 = vld [vmem:[%s183 + $0x80] sm:$0xff]
      %v209 = vld [vmem:[%s183 + $0x88] sm:$0xff]
      %v210 = vld [vmem:[%s183 + $0x90] sm:$0xff]
      %v211 = vld [vmem:[%s183 + $0x98] sm:$0xff]
      %v212 = vld [vmem:[%s183 + $0xa0] sm:$0xff]
      %v213 = vld [vmem:[%s183 + $0xa8] sm:$0xff]
      %v214 = vld [vmem:[%s183 + $0xb0] sm:$0xff]
      %v215 = vld [vmem:[%s183 + $0xb8] sm:$0xff]
      %v216 = vld [vmem:[%s183 + $0xc0] sm:$0xff]
      %v217 = vld [vmem:[%s183 + $0xc8] sm:$0xff]
      %v218 = vld [vmem:[%s183 + $0xd0] sm:$0xff]
      %v219 = vld [vmem:[%s183 + $0xd8] sm:$0xff]
      %v220 = vld [vmem:[%s183 + $0xe0] sm:$0xff]
      %v221 = vld [vmem:[%s183 + $0xe8] sm:$0xff]
      %v222 = vld [vmem:[%s183 + $0xf0] sm:$0xff]
      %v223 = vld [vmem:[%s183 + $0xf8] sm:$0xff]
      %vm257 = vcmask 1040384
      %v258 = vrot.slane 0.0, 7
      %v259 = vsel %vm257, %v258, %v258
      %v260 = vrot.slane %v192, 7
      %v261 = vrot.slane %v193, 7
      %v262 = vsel %vm257, %v260, %v261
      %v263 = vrot.slane %v194, 7
      %v264 = vrot.slane %v195, 7
      %v265 = vsel %vm257, %v263, %v264
      %v266 = vrot.slane %v196, 7
      %v267 = vrot.slane %v197, 7
      %v268 = vsel %vm257, %v266, %v267
      %v269 = vrot.slane %v198, 7
      %v270 = vrot.slane %v199, 7
      %v271 = vsel %vm257, %v269, %v270
      %v272 = vrot.slane %v200, 7
      %v273 = vrot.slane %v201, 7
      %v274 = vsel %vm257, %v272, %v273
      %v275 = vrot.slane %v202, 7
      %v276 = vrot.slane %v203, 7
      %v277 = vsel %vm257, %v275, %v276
      %v278 = vrot.slane %v204, 7
      %v279 = vrot.slane %v205, 7
      %v280 = vsel %vm257, %v278, %v279
      %v281 = vrot.slane %v206, 7
      %v282 = vrot.slane %v207, 7
      %v283 = vsel %vm257, %v281, %v282
      %v284 = vrot.slane %v208, 7
      %v285 = vrot.slane %v209, 7
      %v286 = vsel %vm257, %v284, %v285
      %v287 = vrot.slane %v210, 7
      %v288 = vrot.slane %v211, 7
      %v289 = vsel %vm257, %v287, %v288
      %v290 = vrot.slane %v212, 7
      %v291 = vrot.slane %v213, 7
      %v292 = vsel %vm257, %v290, %v291
      %v293 = vrot.slane %v214, 7
      %v294 = vrot.slane %v215, 7
      %v295 = vsel %vm257, %v293, %v294
      %v296 = vrot.slane %v216, 7
      %v297 = vrot.slane %v217, 7
      %v298 = vsel %vm257, %v296, %v297
      %v299 = vrot.slane %v218, 7
      %v300 = vrot.slane %v219, 7
      %v301 = vsel %vm257, %v299, %v300
      %v302 = vrot.slane %v220, 7
      %v303 = vrot.slane %v221, 7
      %v304 = vsel %vm257, %v302, %v303
      %v305 = vrot.slane %v222, 7
      %v306 = vrot.slane %v223, 7
      %v307 = vsel %vm257, %v305, %v306
      %v358 = vsel %vm257, 0.0, %v258
      %v359 = vsel %vm257, 0.0, %v260
      %v360 = vsel %vm257, 0.0, %v263
      %v361 = vsel %vm257, 0.0, %v266
      %v362 = vsel %vm257, 0.0, %v269
      %v363 = vsel %vm257, 0.0, %v272
      %v364 = vsel %vm257, 0.0, %v275
      %v365 = vsel %vm257, 0.0, %v278
      %v366 = vsel %vm257, 0.0, %v281
      %v367 = vsel %vm257, 0.0, %v284
      %v368 = vsel %vm257, 0.0, %v287
      %v369 = vsel %vm257, 0.0, %v290
      %v370 = vsel %vm257, 0.0, %v293
      %v371 = vsel %vm257, 0.0, %v296
      %v372 = vsel %vm257, 0.0, %v299
      %v373 = vsel %vm257, 0.0, %v302
      %v374 = vsel %vm257, 0.0, %v305
      %v375 = vsel %vm257, %v258, 0.0
      %v376 = vsel %vm257, %v261, 0.0
      %v377 = vsel %vm257, %v264, 0.0
      %v378 = vsel %vm257, %v267, 0.0
      %v379 = vsel %vm257, %v270, 0.0
      %v380 = vsel %vm257, %v273, 0.0
      %v381 = vsel %vm257, %v276, 0.0
      %v382 = vsel %vm257, %v279, 0.0
      %v383 = vsel %vm257, %v282, 0.0
      %v384 = vsel %vm257, %v285, 0.0
      %v385 = vsel %vm257, %v288, 0.0
      %v386 = vsel %vm257, %v291, 0.0
      %v387 = vsel %vm257, %v294, 0.0
      %v388 = vsel %vm257, %v297, 0.0
      %v389 = vsel %vm257, %v300, 0.0
      %v390 = vsel %vm257, %v303, 0.0
      %v391 = vsel %vm257, %v306, 0.0
      %v392 = vld [vmem:[%s175] sm:$0x1]
      %v393 = vlaneseq
      %v394 = vshrl.u32 %v393, 7
      %v395 = vsub.s32 0, %v394
      %v396 = vrot.slane %v392, %v395
      %v397 = vmul.f32 %v358, %v396
      %v398 = vmul.f32 %v259, %v396
      %v399 = vmul.f32 %v359, %v396
      %v400 = vmul.f32 %v262, %v396
      %v401 = vmul.f32 %v360, %v396
      %v402 = vmul.f32 %v265, %v396
      %v403 = vmul.f32 %v361, %v396
      %v404 = vmul.f32 %v268, %v396
      %v405 = vmul.f32 %v362, %v396
      %v406 = vmul.f32 %v271, %v396
      %v407 = vmul.f32 %v363, %v396
      %v408 = vmul.f32 %v274, %v396
      %v409 = vmul.f32 %v364, %v396
      %v410 = vmul.f32 %v277, %v396
      %v411 = vmul.f32 %v365, %v396
      %v412 = vmul.f32 %v280, %v396
      %v413 = vmul.f32 %v366, %v396
      %v414 = vmul.f32 %v283, %v396
      %v415 = vmul.f32 %v367, %v396
      %v416 = vmul.f32 %v286, %v396
      %v417 = vmul.f32 %v368, %v396
      %v418 = vmul.f32 %v289, %v396
      %v419 = vmul.f32 %v369, %v396
      %v420 = vmul.f32 %v292, %v396
      %v421 = vmul.f32 %v370, %v396
      %v422 = vmul.f32 %v295, %v396
      %v423 = vmul.f32 %v371, %v396
      %v424 = vmul.f32 %v298, %v396
      %v425 = vmul.f32 %v372, %v396
      %v426 = vmul.f32 %v301, %v396
      %v427 = vmul.f32 %v373, %v396
      %v428 = vmul.f32 %v304, %v396
      %v429 = vadd.f32 %v397, 0.0
      %v430 = vadd.f32 %v398, 0.0
      %v431 = vadd.f32 %v399, 0.0
      %v432 = vadd.f32 %v400, 0.0
      %v433 = vadd.f32 %v401, 0.0
      %v434 = vadd.f32 %v402, 0.0
      %v435 = vadd.f32 %v403, 0.0
      %v436 = vadd.f32 %v404, 0.0
      %v437 = vadd.f32 %v405, 0.0
      %v438 = vadd.f32 %v406, 0.0
      %v439 = vadd.f32 %v407, 0.0
      %v440 = vadd.f32 %v408, 0.0
      %v441 = vadd.f32 %v409, 0.0
      %v442 = vadd.f32 %v410, 0.0
      %v443 = vadd.f32 %v411, 0.0
      %v444 = vadd.f32 %v412, 0.0
      %v445 = vadd.f32 %v413, 0.0
      %v446 = vadd.f32 %v414, 0.0
      %v447 = vadd.f32 %v415, 0.0
      %v448 = vadd.f32 %v416, 0.0
      %v449 = vadd.f32 %v417, 0.0
      %v450 = vadd.f32 %v418, 0.0
      %v451 = vadd.f32 %v419, 0.0
      %v452 = vadd.f32 %v420, 0.0
      %v453 = vadd.f32 %v421, 0.0
      %v454 = vadd.f32 %v422, 0.0
      %v455 = vadd.f32 %v423, 0.0
      %v456 = vadd.f32 %v424, 0.0
      %v457 = vadd.f32 %v425, 0.0
      %v458 = vadd.f32 %v426, 0.0
      %v459 = vadd.f32 %v427, 0.0
      %v460 = vadd.f32 %v428, 0.0
      %v461 = vld [vmem:[%s175 + $0x1] sm:$0x1]
      %v462 = vlaneseq
      %v463 = vshrl.u32 %v462, 7
      %v464 = vsub.s32 0, %v463
      %v465 = vrot.slane %v461, %v464
      %v466 = vmul.f32 %v358, %v465
      %v467 = vmul.f32 %v259, %v465
      %v468 = vmul.f32 %v375, %v465
      %v469 = vmul.f32 %v359, %v465
      %v470 = vmul.f32 %v262, %v465
      %v471 = vmul.f32 %v376, %v465
      %v472 = vmul.f32 %v360, %v465
      %v473 = vmul.f32 %v265, %v465
      %v474 = vmul.f32 %v377, %v465
      %v475 = vmul.f32 %v361, %v465
      %v476 = vmul.f32 %v268, %v465
      %v477 = vmul.f32 %v378, %v465
      %v478 = vmul.f32 %v362, %v465
      %v479 = vmul.f32 %v271, %v465
      %v480 = vmul.f32 %v379, %v465
      %v481 = vmul.f32 %v363, %v465
      %v482 = vmul.f32 %v274, %v465
      %v483 = vmul.f32 %v380, %v465
      %v484 = vmul.f32 %v364, %v465
      %v485 = vmul.f32 %v277, %v465
      %v486 = vmul.f32 %v381, %v465
      %v487 = vmul.f32 %v365, %v465
      %v488 = vmul.f32 %v280, %v465
      %v489 = vmul.f32 %v382, %v465
      %v490 = vmul.f32 %v366, %v465
      %v491 = vmul.f32 %v283, %v465
      %v492 = vmul.f32 %v383, %v465
      %v493 = vmul.f32 %v367, %v465
      %v494 = vmul.f32 %v286, %v465
      %v495 = vmul.f32 %v384, %v465
      %v496 = vmul.f32 %v368, %v465
      %v497 = vmul.f32 %v289, %v465
      %v498 = vmul.f32 %v385, %v465
      %v499 = vmul.f32 %v369, %v465
      %v500 = vmul.f32 %v292, %v465
      %v501 = vmul.f32 %v386, %v465
      %v502 = vmul.f32 %v370, %v465
      %v503 = vmul.f32 %v295, %v465
      %v504 = vmul.f32 %v387, %v465
      %v505 = vmul.f32 %v371, %v465
      %v506 = vmul.f32 %v298, %v465
      %v507 = vmul.f32 %v388, %v465
      %v508 = vmul.f32 %v372, %v465
      %v509 = vmul.f32 %v301, %v465
      %v510 = vmul.f32 %v389, %v465
      %v511 = vmul.f32 %v373, %v465
      %v512 = vmul.f32 %v304, %v465
      %v513 = vmul.f32 %v390, %v465
      %vm562 = vcmask 1046528
      %v563 = vrot.slane %v466, 1
      %v564 = vrot.slane %v467, 1
      %v565 = vsel %vm562, %v563, %v564
      %v566 = vrot.slane %v468, 1
      %v567 = vsel %vm562, %v564, %v566
      %v568 = vrot.slane %v469, 1
      %v569 = vrot.slane %v470, 1
      %v570 = vsel %vm562, %v568, %v569
      %v571 = vrot.slane %v471, 1
      %v572 = vsel %vm562, %v569, %v571
      %v573 = vrot.slane %v472, 1
      %v574 = vrot.slane %v473, 1
      %v575 = vsel %vm562, %v573, %v574
      %v576 = vrot.slane %v474, 1
      %v577 = vsel %vm562, %v574, %v576
      %v578 = vrot.slane %v475, 1
      %v579 = vrot.slane %v476, 1
      %v580 = vsel %vm562, %v578, %v579
      %v581 = vrot.slane %v477, 1
      %v582 = vsel %vm562, %v579, %v581
      %v583 = vrot.slane %v478, 1
      %v584 = vrot.slane %v479, 1
      %v585 = vsel %vm562, %v583, %v584
      %v586 = vrot.slane %v480, 1
      %v587 = vsel %vm562, %v584, %v586
      %v588 = vrot.slane %v481, 1
      %v589 = vrot.slane %v482, 1
      %v590 = vsel %vm562, %v588, %v589
      %v591 = vrot.slane %v483, 1
      %v592 = vsel %vm562, %v589, %v591
      %v593 = vrot.slane %v484, 1
      %v594 = vrot.slane %v485, 1
      %v595 = vsel %vm562, %v593, %v594
      %v596 = vrot.slane %v486, 1
      %v597 = vsel %vm562, %v594, %v596
      %v598 = vrot.slane %v487, 1
      %v599 = vrot.slane %v488, 1
      %v600 = vsel %vm562, %v598, %v599
      %v601 = vrot.slane %v489, 1
      %v602 = vsel %vm562, %v599, %v601
      %v603 = vrot.slane %v490, 1
      %v604 = vrot.slane %v491, 1
      %v605 = vsel %vm562, %v603, %v604
      %v606 = vrot.slane %v492, 1
      %v607 = vsel %vm562, %v604, %v606
      %v608 = vrot.slane %v493, 1
      %v609 = vrot.slane %v494, 1
      %v610 = vsel %vm562, %v608, %v609
      %v611 = vrot.slane %v495, 1
      %v612 = vsel %vm562, %v609, %v611
      %v613 = vrot.slane %v496, 1
      %v614 = vrot.slane %v497, 1
      %v615 = vsel %vm562, %v613, %v614
      %v616 = vrot.slane %v498, 1
      %v617 = vsel %vm562, %v614, %v616
      %v618 = vrot.slane %v499, 1
      %v619 = vrot.slane %v500, 1
      %v620 = vsel %vm562, %v618, %v619
      %v621 = vrot.slane %v501, 1
      %v622 = vsel %vm562, %v619, %v621
      %v623 = vrot.slane %v502, 1
      %v624 = vrot.slane %v503, 1
      %v625 = vsel %vm562, %v623, %v624
      %v626 = vrot.slane %v504, 1
      %v627 = vsel %vm562, %v624, %v626
      %v628 = vrot.slane %v505, 1
      %v629 = vrot.slane %v506, 1
      %v630 = vsel %vm562, %v628, %v629
      %v631 = vrot.slane %v507, 1
      %v632 = vsel %vm562, %v629, %v631
      %v633 = vrot.slane %v508, 1
      %v634 = vrot.slane %v509, 1
      %v635 = vsel %vm562, %v633, %v634
      %v636 = vrot.slane %v510, 1
      %v637 = vsel %vm562, %v634, %v636
      %v638 = vrot.slane %v511, 1
      %v639 = vrot.slane %v512, 1
      %v640 = vsel %vm562, %v638, %v639
      %v641 = vrot.slane %v513, 1
      %v642 = vsel %vm562, %v639, %v641
      %v675 = vadd.f32 %v429, %v565
      %v676 = vadd.f32 %v430, %v567
      %v677 = vadd.f32 %v431, %v570
      %v678 = vadd.f32 %v432, %v572
      %v679 = vadd.f32 %v433, %v575
      %v680 = vadd.f32 %v434, %v577
      %v681 = vadd.f32 %v435, %v580
      %v682 = vadd.f32 %v436, %v582
      %v683 = vadd.f32 %v437, %v585
      %v684 = vadd.f32 %v438, %v587
      %v685 = vadd.f32 %v439, %v590
      %v686 = vadd.f32 %v440, %v592
      %v687 = vadd.f32 %v441, %v595
      %v688 = vadd.f32 %v442, %v597
      %v689 = vadd.f32 %v443, %v600
      %v690 = vadd.f32 %v444, %v602
      %v691 = vadd.f32 %v445, %v605
      %v692 = vadd.f32 %v446, %v607
      %v693 = vadd.f32 %v447, %v610
      %v694 = vadd.f32 %v448, %v612
      %v695 = vadd.f32 %v449, %v615
      %v696 = vadd.f32 %v450, %v617
      %v697 = vadd.f32 %v451, %v620
      %v698 = vadd.f32 %v452, %v622
      %v699 = vadd.f32 %v453, %v625
      %v700 = vadd.f32 %v454, %v627
      %v701 = vadd.f32 %v455, %v630
      %v702 = vadd.f32 %v456, %v632
      %v703 = vadd.f32 %v457, %v635
      %v704 = vadd.f32 %v458, %v637
      %v705 = vadd.f32 %v459, %v640
      %v706 = vadd.f32 %v460, %v642
      %v707 = vld [vmem:[%s175 + $0x2] sm:$0x1]
      %v708 = vlaneseq
      %v709 = vshrl.u32 %v708, 7
      %v710 = vsub.s32 0, %v709
      %v711 = vrot.slane %v707, %v710
      %v712 = vmul.f32 %v358, %v711
      %v713 = vmul.f32 %v259, %v711
      %v714 = vmul.f32 %v375, %v711
      %v715 = vmul.f32 %v359, %v711
      %v716 = vmul.f32 %v262, %v711
      %v717 = vmul.f32 %v376, %v711
      %v718 = vmul.f32 %v360, %v711
      %v719 = vmul.f32 %v265, %v711
      %v720 = vmul.f32 %v377, %v711
      %v721 = vmul.f32 %v361, %v711
      %v722 = vmul.f32 %v268, %v711
      %v723 = vmul.f32 %v378, %v711
      %v724 = vmul.f32 %v362, %v711
      %v725 = vmul.f32 %v271, %v711
      %v726 = vmul.f32 %v379, %v711
      %v727 = vmul.f32 %v363, %v711
      %v728 = vmul.f32 %v274, %v711
      %v729 = vmul.f32 %v380, %v711
      %v730 = vmul.f32 %v364, %v711
      %v731 = vmul.f32 %v277, %v711
      %v732 = vmul.f32 %v381, %v711
      %v733 = vmul.f32 %v365, %v711
      %v734 = vmul.f32 %v280, %v711
      %v735 = vmul.f32 %v382, %v711
      %v736 = vmul.f32 %v366, %v711
      %v737 = vmul.f32 %v283, %v711
      %v738 = vmul.f32 %v383, %v711
      %v739 = vmul.f32 %v367, %v711
      %v740 = vmul.f32 %v286, %v711
      %v741 = vmul.f32 %v384, %v711
      %v742 = vmul.f32 %v368, %v711
      %v743 = vmul.f32 %v289, %v711
      %v744 = vmul.f32 %v385, %v711
      %v745 = vmul.f32 %v369, %v711
      %v746 = vmul.f32 %v292, %v711
      %v747 = vmul.f32 %v386, %v711
      %v748 = vmul.f32 %v370, %v711
      %v749 = vmul.f32 %v295, %v711
      %v750 = vmul.f32 %v387, %v711
      %v751 = vmul.f32 %v371, %v711
      %v752 = vmul.f32 %v298, %v711
      %v753 = vmul.f32 %v388, %v711
      %v754 = vmul.f32 %v372, %v711
      %v755 = vmul.f32 %v301, %v711
      %v756 = vmul.f32 %v389, %v711
      %v757 = vmul.f32 %v373, %v711
      %v758 = vmul.f32 %v304, %v711
      %v759 = vmul.f32 %v390, %v711
      %vm808 = vcmask 1045504
      %v809 = vrot.slane %v712, 2
      %v810 = vrot.slane %v713, 2
      %v811 = vsel %vm808, %v809, %v810
      %v812 = vrot.slane %v714, 2
      %v813 = vsel %vm808, %v810, %v812
      %v814 = vrot.slane %v715, 2
      %v815 = vrot.slane %v716, 2
      %v816 = vsel %vm808, %v814, %v815
      %v817 = vrot.slane %v717, 2
      %v818 = vsel %vm808, %v815, %v817
      %v819 = vrot.slane %v718, 2
      %v820 = vrot.slane %v719, 2
      %v821 = vsel %vm808, %v819, %v820
      %v822 = vrot.slane %v720, 2
      %v823 = vsel %vm808, %v820, %v822
      %v824 = vrot.slane %v721, 2
      %v825 = vrot.slane %v722, 2
      %v826 = vsel %vm808, %v824, %v825
      %v827 = vrot.slane %v723, 2
      %v828 = vsel %vm808, %v825, %v827
      %v829 = vrot.slane %v724, 2
      %v830 = vrot.slane %v725, 2
      %v831 = vsel %vm808, %v829, %v830
      %v832 = vrot.slane %v726, 2
      %v833 = vsel %vm808, %v830, %v832
      %v834 = vrot.slane %v727, 2
      %v835 = vrot.slane %v728, 2
      %v836 = vsel %vm808, %v834, %v835
      %v837 = vrot.slane %v729, 2
      %v838 = vsel %vm808, %v835, %v837
      %v839 = vrot.slane %v730, 2
      %v840 = vrot.slane %v731, 2
      %v841 = vsel %vm808, %v839, %v840
      %v842 = vrot.slane %v732, 2
      %v843 = vsel %vm808, %v840, %v842
      %v844 = vrot.slane %v733, 2
      %v845 = vrot.slane %v734, 2
      %v846 = vsel %vm808, %v844, %v845
      %v847 = vrot.slane %v735, 2
      %v848 = vsel %vm808, %v845, %v847
      %v849 = vrot.slane %v736, 2
      %v850 = vrot.slane %v737, 2
      %v851 = vsel %vm808, %v849, %v850
      %v852 = vrot.slane %v738, 2
      %v853 = vsel %vm808, %v850, %v852
      %v854 = vrot.slane %v739, 2
      %v855 = vrot.slane %v740, 2
      %v856 = vsel %vm808, %v854, %v855
      %v857 = vrot.slane %v741, 2
      %v858 = vsel %vm808, %v855, %v857
      %v859 = vrot.slane %v742, 2
      %v860 = vrot.slane %v743, 2
      %v861 = vsel %vm808, %v859, %v860
      %v862 = vrot.slane %v744, 2
      %v863 = vsel %vm808, %v860, %v862
      %v864 = vrot.slane %v745, 2
      %v865 = vrot.slane %v746, 2
      %v866 = vsel %vm808, %v864, %v865
      %v867 = vrot.slane %v747, 2
      %v868 = vsel %vm808, %v865, %v867
      %v869 = vrot.slane %v748, 2
      %v870 = vrot.slane %v749, 2
      %v871 = vsel %vm808, %v869, %v870
      %v872 = vrot.slane %v750, 2
      %v873 = vsel %vm808, %v870, %v872
      %v874 = vrot.slane %v751, 2
      %v875 = vrot.slane %v752, 2
      %v876 = vsel %vm808, %v874, %v875
      %v877 = vrot.slane %v753, 2
      %v878 = vsel %vm808, %v875, %v877
      %v879 = vrot.slane %v754, 2
      %v880 = vrot.slane %v755, 2
      %v881 = vsel %vm808, %v879, %v880
      %v882 = vrot.slane %v756, 2
      %v883 = vsel %vm808, %v880, %v882
      %v884 = vrot.slane %v757, 2
      %v885 = vrot.slane %v758, 2
      %v886 = vsel %vm808, %v884, %v885
      %v887 = vrot.slane %v759, 2
      %v888 = vsel %vm808, %v885, %v887
      %v921 = vadd.f32 %v675, %v811
      %v922 = vadd.f32 %v676, %v813
      %v923 = vadd.f32 %v677, %v816
      %v924 = vadd.f32 %v678, %v818
      %v925 = vadd.f32 %v679, %v821
      %v926 = vadd.f32 %v680, %v823
      %v927 = vadd.f32 %v681, %v826
      %v928 = vadd.f32 %v682, %v828
      %v929 = vadd.f32 %v683, %v831
      %v930 = vadd.f32 %v684, %v833
      %v931 = vadd.f32 %v685, %v836
      %v932 = vadd.f32 %v686, %v838
      %v933 = vadd.f32 %v687, %v841
      %v934 = vadd.f32 %v688, %v843
      %v935 = vadd.f32 %v689, %v846
      %v936 = vadd.f32 %v690, %v848
      %v937 = vadd.f32 %v691, %v851
      %v938 = vadd.f32 %v692, %v853
      %v939 = vadd.f32 %v693, %v856
      %v940 = vadd.f32 %v694, %v858
      %v941 = vadd.f32 %v695, %v861
      %v942 = vadd.f32 %v696, %v863
      %v943 = vadd.f32 %v697, %v866
      %v944 = vadd.f32 %v698, %v868
      %v945 = vadd.f32 %v699, %v871
      %v946 = vadd.f32 %v700, %v873
      %v947 = vadd.f32 %v701, %v876
      %v948 = vadd.f32 %v702, %v878
      %v949 = vadd.f32 %v703, %v881
      %v950 = vadd.f32 %v704, %v883
      %v951 = vadd.f32 %v705, %v886
      %v952 = vadd.f32 %v706, %v888
      %v953 = vld [vmem:[%s175 + $0x3] sm:$0x1]
      %v954 = vlaneseq
      %v955 = vshrl.u32 %v954, 7
      %v956 = vsub.s32 0, %v955
      %v957 = vrot.slane %v953, %v956
      %v958 = vmul.f32 %v359, %v957
      %v959 = vmul.f32 %v262, %v957
      %v960 = vmul.f32 %v360, %v957
      %v961 = vmul.f32 %v265, %v957
      %v962 = vmul.f32 %v361, %v957
      %v963 = vmul.f32 %v268, %v957
      %v964 = vmul.f32 %v362, %v957
      %v965 = vmul.f32 %v271, %v957
      %v966 = vmul.f32 %v363, %v957
      %v967 = vmul.f32 %v274, %v957
      %v968 = vmul.f32 %v364, %v957
      %v969 = vmul.f32 %v277, %v957
      %v970 = vmul.f32 %v365, %v957
      %v971 = vmul.f32 %v280, %v957
      %v972 = vmul.f32 %v366, %v957
      %v973 = vmul.f32 %v283, %v957
      %v974 = vmul.f32 %v367, %v957
      %v975 = vmul.f32 %v286, %v957
      %v976 = vmul.f32 %v368, %v957
      %v977 = vmul.f32 %v289, %v957
      %v978 = vmul.f32 %v369, %v957
      %v979 = vmul.f32 %v292, %v957
      %v980 = vmul.f32 %v370, %v957
      %v981 = vmul.f32 %v295, %v957
      %v982 = vmul.f32 %v371, %v957
      %v983 = vmul.f32 %v298, %v957
      %v984 = vmul.f32 %v372, %v957
      %v985 = vmul.f32 %v301, %v957
      %v986 = vmul.f32 %v373, %v957
      %v987 = vmul.f32 %v304, %v957
      %v988 = vmul.f32 %v374, %v957
      %v989 = vmul.f32 %v307, %v957
      %v990 = vadd.f32 %v921, %v958
      %v991 = vadd.f32 %v922, %v959
      %v992 = vadd.f32 %v923, %v960
      %v993 = vadd.f32 %v924, %v961
      %v994 = vadd.f32 %v925, %v962
      %v995 = vadd.f32 %v926, %v963
      %v996 = vadd.f32 %v927, %v964
      %v997 = vadd.f32 %v928, %v965
      %v998 = vadd.f32 %v929, %v966
      %v999 = vadd.f32 %v930, %v967
      %v1000 = vadd.f32 %v931, %v968
      %v1001 = vadd.f32 %v932, %v969
      %v1002 = vadd.f32 %v933, %v970
      %v1003 = vadd.f32 %v934, %v971
      %v1004 = vadd.f32 %v935, %v972
      %v1005 = vadd.f32 %v936, %v973
      %v1006 = vadd.f32 %v937, %v974
      %v1007 = vadd.f32 %v938, %v975
      %v1008 = vadd.f32 %v939, %v976
      %v1009 = vadd.f32 %v940, %v977
      %v1010 = vadd.f32 %v941, %v978
      %v1011 = vadd.f32 %v942, %v979
      %v1012 = vadd.f32 %v943, %v980
      %v1013 = vadd.f32 %v944, %v981
      %v1014 = vadd.f32 %v945, %v982
      %v1015 = vadd.f32 %v946, %v983
      %v1016 = vadd.f32 %v947, %v984
      %v1017 = vadd.f32 %v948, %v985
      %v1018 = vadd.f32 %v949, %v986
      %v1019 = vadd.f32 %v950, %v987
      %v1020 = vadd.f32 %v951, %v988
      %v1021 = vadd.f32 %v952, %v989
      %v1022 = vld [vmem:[%s175 + $0x4] sm:$0x1]
      %v1023 = vlaneseq
      %v1024 = vshrl.u32 %v1023, 7
      %v1025 = vsub.s32 0, %v1024
      %v1026 = vrot.slane %v1022, %v1025
      %v1027 = vmul.f32 %v359, %v1026
      %v1028 = vmul.f32 %v262, %v1026
      %v1029 = vmul.f32 %v376, %v1026
      %v1030 = vmul.f32 %v360, %v1026
      %v1031 = vmul.f32 %v265, %v1026
      %v1032 = vmul.f32 %v377, %v1026
      %v1033 = vmul.f32 %v361, %v1026
      %v1034 = vmul.f32 %v268, %v1026
      %v1035 = vmul.f32 %v378, %v1026
      %v1036 = vmul.f32 %v362, %v1026
      %v1037 = vmul.f32 %v271, %v1026
      %v1038 = vmul.f32 %v379, %v1026
      %v1039 = vmul.f32 %v363, %v1026
      %v1040 = vmul.f32 %v274, %v1026
      %v1041 = vmul.f32 %v380, %v1026
      %v1042 = vmul.f32 %v364, %v1026
      %v1043 = vmul.f32 %v277, %v1026
      %v1044 = vmul.f32 %v381, %v1026
      %v1045 = vmul.f32 %v365, %v1026
      %v1046 = vmul.f32 %v280, %v1026
      %v1047 = vmul.f32 %v382, %v1026
      %v1048 = vmul.f32 %v366, %v1026
      %v1049 = vmul.f32 %v283, %v1026
      %v1050 = vmul.f32 %v383, %v1026
      %v1051 = vmul.f32 %v367, %v1026
      %v1052 = vmul.f32 %v286, %v1026
      %v1053 = vmul.f32 %v384, %v1026
      %v1054 = vmul.f32 %v368, %v1026
      %v1055 = vmul.f32 %v289, %v1026
      %v1056 = vmul.f32 %v385, %v1026
      %v1057 = vmul.f32 %v369, %v1026
      %v1058 = vmul.f32 %v292, %v1026
      %v1059 = vmul.f32 %v386, %v1026
      %v1060 = vmul.f32 %v370, %v1026
      %v1061 = vmul.f32 %v295, %v1026
      %v1062 = vmul.f32 %v387, %v1026
      %v1063 = vmul.f32 %v371, %v1026
      %v1064 = vmul.f32 %v298, %v1026
      %v1065 = vmul.f32 %v388, %v1026
      %v1066 = vmul.f32 %v372, %v1026
      %v1067 = vmul.f32 %v301, %v1026
      %v1068 = vmul.f32 %v389, %v1026
      %v1069 = vmul.f32 %v373, %v1026
      %v1070 = vmul.f32 %v304, %v1026
      %v1071 = vmul.f32 %v390, %v1026
      %v1072 = vmul.f32 %v374, %v1026
      %v1073 = vmul.f32 %v307, %v1026
      %v1074 = vmul.f32 %v391, %v1026
      %v1123 = vrot.slane %v1027, 1
      %v1124 = vrot.slane %v1028, 1
      %v1125 = vsel %vm562, %v1123, %v1124
      %v1126 = vrot.slane %v1029, 1
      %v1127 = vsel %vm562, %v1124, %v1126
      %v1128 = vrot.slane %v1030, 1
      %v1129 = vrot.slane %v1031, 1
      %v1130 = vsel %vm562, %v1128, %v1129
      %v1131 = vrot.slane %v1032, 1
      %v1132 = vsel %vm562, %v1129, %v1131
      %v1133 = vrot.slane %v1033, 1
      %v1134 = vrot.slane %v1034, 1
      %v1135 = vsel %vm562, %v1133, %v1134
      %v1136 = vrot.slane %v1035, 1
      %v1137 = vsel %vm562, %v1134, %v1136
      %v1138 = vrot.slane %v1036, 1
      %v1139 = vrot.slane %v1037, 1
      %v1140 = vsel %vm562, %v1138, %v1139
      %v1141 = vrot.slane %v1038, 1
      %v1142 = vsel %vm562, %v1139, %v1141
      %v1143 = vrot.slane %v1039, 1
      %v1144 = vrot.slane %v1040, 1
      %v1145 = vsel %vm562, %v1143, %v1144
      %v1146 = vrot.slane %v1041, 1
      %v1147 = vsel %vm562, %v1144, %v1146
      %v1148 = vrot.slane %v1042, 1
      %v1149 = vrot.slane %v1043, 1
      %v1150 = vsel %vm562, %v1148, %v1149
      %v1151 = vrot.slane %v1044, 1
      %v1152 = vsel %vm562, %v1149, %v1151
      %v1153 = vrot.slane %v1045, 1
      %v1154 = vrot.slane %v1046, 1
      %v1155 = vsel %vm562, %v1153, %v1154
      %v1156 = vrot.slane %v1047, 1
      %v1157 = vsel %vm562, %v1154, %v1156
      %v1158 = vrot.slane %v1048, 1
      %v1159 = vrot.slane %v1049, 1
      %v1160 = vsel %vm562, %v1158, %v1159
      %v1161 = vrot.slane %v1050, 1
      %v1162 = vsel %vm562, %v1159, %v1161
      %v1163 = vrot.slane %v1051, 1
      %v1164 = vrot.slane %v1052, 1
      %v1165 = vsel %vm562, %v1163, %v1164
      %v1166 = vrot.slane %v1053, 1
      %v1167 = vsel %vm562, %v1164, %v1166
      %v1168 = vrot.slane %v1054, 1
      %v1169 = vrot.slane %v1055, 1
      %v1170 = vsel %vm562, %v1168, %v1169
      %v1171 = vrot.slane %v1056, 1
      %v1172 = vsel %vm562, %v1169, %v1171
      %v1173 = vrot.slane %v1057, 1
      %v1174 = vrot.slane %v1058, 1
      %v1175 = vsel %vm562, %v1173, %v1174
      %v1176 = vrot.slane %v1059, 1
      %v1177 = vsel %vm562, %v1174, %v1176
      %v1178 = vrot.slane %v1060, 1
      %v1179 = vrot.slane %v1061, 1
      %v1180 = vsel %vm562, %v1178, %v1179
      %v1181 = vrot.slane %v1062, 1
      %v1182 = vsel %vm562, %v1179, %v1181
      %v1183 = vrot.slane %v1063, 1
      %v1184 = vrot.slane %v1064, 1
      %v1185 = vsel %vm562, %v1183, %v1184
      %v1186 = vrot.slane %v1065, 1
      %v1187 = vsel %vm562, %v1184, %v1186
      %v1188 = vrot.slane %v1066, 1
      %v1189 = vrot.slane %v1067, 1
      %v1190 = vsel %vm562, %v1188, %v1189
      %v1191 = vrot.slane %v1068, 1
      %v1192 = vsel %vm562, %v1189, %v1191
      %v1193 = vrot.slane %v1069, 1
      %v1194 = vrot.slane %v1070, 1
      %v1195 = vsel %vm562, %v1193, %v1194
      %v1196 = vrot.slane %v1071, 1
      %v1197 = vsel %vm562, %v1194, %v1196
      %v1198 = vrot.slane %v1072, 1
      %v1199 = vrot.slane %v1073, 1
      %v1200 = vsel %vm562, %v1198, %v1199
      %v1201 = vrot.slane %v1074, 1
      %v1202 = vsel %vm562, %v1199, %v1201
      %v1235 = vadd.f32 %v990, %v1125
      %v1236 = vadd.f32 %v991, %v1127
      %v1237 = vadd.f32 %v992, %v1130
      %v1238 = vadd.f32 %v993, %v1132
      %v1239 = vadd.f32 %v994, %v1135
      %v1240 = vadd.f32 %v995, %v1137
      %v1241 = vadd.f32 %v996, %v1140
      %v1242 = vadd.f32 %v997, %v1142
      %v1243 = vadd.f32 %v998, %v1145
      %v1244 = vadd.f32 %v999, %v1147
      %v1245 = vadd.f32 %v1000, %v1150
      %v1246 = vadd.f32 %v1001, %v1152
      %v1247 = vadd.f32 %v1002, %v1155
      %v1248 = vadd.f32 %v1003, %v1157
      %v1249 = vadd.f32 %v1004, %v1160
      %v1250 = vadd.f32 %v1005, %v1162
      %v1251 = vadd.f32 %v1006, %v1165
      %v1252 = vadd.f32 %v1007, %v1167
      %v1253 = vadd.f32 %v1008, %v1170
      %v1254 = vadd.f32 %v1009, %v1172
      %v1255 = vadd.f32 %v1010, %v1175
      %v1256 = vadd.f32 %v1011, %v1177
      %v1257 = vadd.f32 %v1012, %v1180
      %v1258 = vadd.f32 %v1013, %v1182
      %v1259 = vadd.f32 %v1014, %v1185
      %v1260 = vadd.f32 %v1015, %v1187
      %v1261 = vadd.f32 %v1016, %v1190
      %v1262 = vadd.f32 %v1017, %v1192
      %v1263 = vadd.f32 %v1018, %v1195
      %v1264 = vadd.f32 %v1019, %v1197
      %v1265 = vadd.f32 %v1020, %v1200
      %v1266 = vadd.f32 %v1021, %v1202
      %v1267 = vld [vmem:[%s175 + $0x5] sm:$0x1]
      %v1268 = vlaneseq
      %v1269 = vshrl.u32 %v1268, 7
      %v1270 = vsub.s32 0, %v1269
      %v1271 = vrot.slane %v1267, %v1270
      %v1272 = vmul.f32 %v359, %v1271
      %v1273 = vmul.f32 %v262, %v1271
      %v1274 = vmul.f32 %v376, %v1271
      %v1275 = vmul.f32 %v360, %v1271
      %v1276 = vmul.f32 %v265, %v1271
      %v1277 = vmul.f32 %v377, %v1271
      %v1278 = vmul.f32 %v361, %v1271
      %v1279 = vmul.f32 %v268, %v1271
      %v1280 = vmul.f32 %v378, %v1271
      %v1281 = vmul.f32 %v362, %v1271
      %v1282 = vmul.f32 %v271, %v1271
      %v1283 = vmul.f32 %v379, %v1271
      %v1284 = vmul.f32 %v363, %v1271
      %v1285 = vmul.f32 %v274, %v1271
      %v1286 = vmul.f32 %v380, %v1271
      %v1287 = vmul.f32 %v364, %v1271
      %v1288 = vmul.f32 %v277, %v1271
      %v1289 = vmul.f32 %v381, %v1271
      %v1290 = vmul.f32 %v365, %v1271
      %v1291 = vmul.f32 %v280, %v1271
      %v1292 = vmul.f32 %v382, %v1271
      %v1293 = vmul.f32 %v366, %v1271
      %v1294 = vmul.f32 %v283, %v1271
      %v1295 = vmul.f32 %v383, %v1271
      %v1296 = vmul.f32 %v367, %v1271
      %v1297 = vmul.f32 %v286, %v1271
      %v1298 = vmul.f32 %v384, %v1271
      %v1299 = vmul.f32 %v368, %v1271
      %v1300 = vmul.f32 %v289, %v1271
      %v1301 = vmul.f32 %v385, %v1271
      %v1302 = vmul.f32 %v369, %v1271
      %v1303 = vmul.f32 %v292, %v1271
      %v1304 = vmul.f32 %v386, %v1271
      %v1305 = vmul.f32 %v370, %v1271
      %v1306 = vmul.f32 %v295, %v1271
      %v1307 = vmul.f32 %v387, %v1271
      %v1308 = vmul.f32 %v371, %v1271
      %v1309 = vmul.f32 %v298, %v1271
      %v1310 = vmul.f32 %v388, %v1271
      %v1311 = vmul.f32 %v372, %v1271
      %v1312 = vmul.f32 %v301, %v1271
      %v1313 = vmul.f32 %v389, %v1271
      %v1314 = vmul.f32 %v373, %v1271
      %v1315 = vmul.f32 %v304, %v1271
      %v1316 = vmul.f32 %v390, %v1271
      %v1317 = vmul.f32 %v374, %v1271
      %v1318 = vmul.f32 %v307, %v1271
      %v1319 = vmul.f32 %v391, %v1271
      %v1368 = vrot.slane %v1272, 2
      %v1369 = vrot.slane %v1273, 2
      %v1370 = vsel %vm808, %v1368, %v1369
      %v1371 = vrot.slane %v1274, 2
      %v1372 = vsel %vm808, %v1369, %v1371
      %v1373 = vrot.slane %v1275, 2
      %v1374 = vrot.slane %v1276, 2
      %v1375 = vsel %vm808, %v1373, %v1374
      %v1376 = vrot.slane %v1277, 2
      %v1377 = vsel %vm808, %v1374, %v1376
      %v1378 = vrot.slane %v1278, 2
      %v1379 = vrot.slane %v1279, 2
      %v1380 = vsel %vm808, %v1378, %v1379
      %v1381 = vrot.slane %v1280, 2
      %v1382 = vsel %vm808, %v1379, %v1381
      %v1383 = vrot.slane %v1281, 2
      %v1384 = vrot.slane %v1282, 2
      %v1385 = vsel %vm808, %v1383, %v1384
      %v1386 = vrot.slane %v1283, 2
      %v1387 = vsel %vm808, %v1384, %v1386
      %v1388 = vrot.slane %v1284, 2
      %v1389 = vrot.slane %v1285, 2
      %v1390 = vsel %vm808, %v1388, %v1389
      %v1391 = vrot.slane %v1286, 2
      %v1392 = vsel %vm808, %v1389, %v1391
      %v1393 = vrot.slane %v1287, 2
      %v1394 = vrot.slane %v1288, 2
      %v1395 = vsel %vm808, %v1393, %v1394
      %v1396 = vrot.slane %v1289, 2
      %v1397 = vsel %vm808, %v1394, %v1396
      %v1398 = vrot.slane %v1290, 2
      %v1399 = vrot.slane %v1291, 2
      %v1400 = vsel %vm808, %v1398, %v1399
      %v1401 = vrot.slane %v1292, 2
      %v1402 = vsel %vm808, %v1399, %v1401
      %v1403 = vrot.slane %v1293, 2
      %v1404 = vrot.slane %v1294, 2
      %v1405 = vsel %vm808, %v1403, %v1404
      %v1406 = vrot.slane %v1295, 2
      %v1407 = vsel %vm808, %v1404, %v1406
      %v1408 = vrot.slane %v1296, 2
      %v1409 = vrot.slane %v1297, 2
      %v1410 = vsel %vm808, %v1408, %v1409
      %v1411 = vrot.slane %v1298, 2
      %v1412 = vsel %vm808, %v1409, %v1411
      %v1413 = vrot.slane %v1299, 2
      %v1414 = vrot.slane %v1300, 2
      %v1415 = vsel %vm808, %v1413, %v1414
      %v1416 = vrot.slane %v1301, 2
      %v1417 = vsel %vm808, %v1414, %v1416
      %v1418 = vrot.slane %v1302, 2
      %v1419 = vrot.slane %v1303, 2
      %v1420 = vsel %vm808, %v1418, %v1419
      %v1421 = vrot.slane %v1304, 2
      %v1422 = vsel %vm808, %v1419, %v1421
      %v1423 = vrot.slane %v1305, 2
      %v1424 = vrot.slane %v1306, 2
      %v1425 = vsel %vm808, %v1423, %v1424
      %v1426 = vrot.slane %v1307, 2
      %v1427 = vsel %vm808, %v1424, %v1426
      %v1428 = vrot.slane %v1308, 2
      %v1429 = vrot.slane %v1309, 2
      %v1430 = vsel %vm808, %v1428, %v1429
      %v1431 = vrot.slane %v1310, 2
      %v1432 = vsel %vm808, %v1429, %v1431
      %v1433 = vrot.slane %v1311, 2
      %v1434 = vrot.slane %v1312, 2
      %v1435 = vsel %vm808, %v1433, %v1434
      %v1436 = vrot.slane %v1313, 2
      %v1437 = vsel %vm808, %v1434, %v1436
      %v1438 = vrot.slane %v1314, 2
      %v1439 = vrot.slane %v1315, 2
      %v1440 = vsel %vm808, %v1438, %v1439
      %v1441 = vrot.slane %v1316, 2
      %v1442 = vsel %vm808, %v1439, %v1441
      %v1443 = vrot.slane %v1317, 2
      %v1444 = vrot.slane %v1318, 2
      %v1445 = vsel %vm808, %v1443, %v1444
      %v1446 = vrot.slane %v1319, 2
      %v1447 = vsel %vm808, %v1444, %v1446
      %v1480 = vadd.f32 %v1235, %v1370
      %v1481 = vadd.f32 %v1236, %v1372
      %v1482 = vadd.f32 %v1237, %v1375
      %v1483 = vadd.f32 %v1238, %v1377
      %v1484 = vadd.f32 %v1239, %v1380
      %v1485 = vadd.f32 %v1240, %v1382
      %v1486 = vadd.f32 %v1241, %v1385
      %v1487 = vadd.f32 %v1242, %v1387
      %v1488 = vadd.f32 %v1243, %v1390
      %v1489 = vadd.f32 %v1244, %v1392
      %v1490 = vadd.f32 %v1245, %v1395
      %v1491 = vadd.f32 %v1246, %v1397
      %v1492 = vadd.f32 %v1247, %v1400
      %v1493 = vadd.f32 %v1248, %v1402
      %v1494 = vadd.f32 %v1249, %v1405
      %v1495 = vadd.f32 %v1250, %v1407
      %v1496 = vadd.f32 %v1251, %v1410
      %v1497 = vadd.f32 %v1252, %v1412
      %v1498 = vadd.f32 %v1253, %v1415
      %v1499 = vadd.f32 %v1254, %v1417
      %v1500 = vadd.f32 %v1255, %v1420
      %v1501 = vadd.f32 %v1256, %v1422
      %v1502 = vadd.f32 %v1257, %v1425
      %v1503 = vadd.f32 %v1258, %v1427
      %v1504 = vadd.f32 %v1259, %v1430
      %v1505 = vadd.f32 %v1260, %v1432
      %v1506 = vadd.f32 %v1261, %v1435
      %v1507 = vadd.f32 %v1262, %v1437
      %v1508 = vadd.f32 %v1263, %v1440
      %v1509 = vadd.f32 %v1264, %v1442
      %v1510 = vadd.f32 %v1265, %v1445
      %v1511 = vadd.f32 %v1266, %v1447
      %v1512 = vld [vmem:[%s175 + $0x6] sm:$0x1]
      %v1513 = vlaneseq
      %v1514 = vshrl.u32 %v1513, 7
      %v1515 = vsub.s32 0, %v1514
      %v1516 = vrot.slane %v1512, %v1515
      %v1517 = vmul.f32 %v360, %v1516
      %v1518 = vmul.f32 %v265, %v1516
      %v1519 = vmul.f32 %v361, %v1516
      %v1520 = vmul.f32 %v268, %v1516
      %v1521 = vmul.f32 %v362, %v1516
      %v1522 = vmul.f32 %v271, %v1516
      %v1523 = vmul.f32 %v363, %v1516
      %v1524 = vmul.f32 %v274, %v1516
      %v1525 = vmul.f32 %v364, %v1516
      %v1526 = vmul.f32 %v277, %v1516
      %v1527 = vmul.f32 %v365, %v1516
      %v1528 = vmul.f32 %v280, %v1516
      %v1529 = vmul.f32 %v366, %v1516
      %v1530 = vmul.f32 %v283, %v1516
      %v1531 = vmul.f32 %v367, %v1516
      %v1532 = vmul.f32 %v286, %v1516
      %v1533 = vmul.f32 %v368, %v1516
      %v1534 = vmul.f32 %v289, %v1516
      %v1535 = vmul.f32 %v369, %v1516
      %v1536 = vmul.f32 %v292, %v1516
      %v1537 = vmul.f32 %v370, %v1516
      %v1538 = vmul.f32 %v295, %v1516
      %v1539 = vmul.f32 %v371, %v1516
      %v1540 = vmul.f32 %v298, %v1516
      %v1541 = vmul.f32 %v372, %v1516
      %v1542 = vmul.f32 %v301, %v1516
      %v1543 = vmul.f32 %v373, %v1516
      %v1544 = vmul.f32 %v304, %v1516
      %v1545 = vmul.f32 %v374, %v1516
      %v1546 = vmul.f32 %v307, %v1516
      %v1547 = vmul.f32 %v358, %v1516
      %v1548 = vmul.f32 %v259, %v1516
      %v1549 = vadd.f32 %v1480, %v1517
      %v1550 = vadd.f32 %v1481, %v1518
      %v1551 = vadd.f32 %v1482, %v1519
      %v1552 = vadd.f32 %v1483, %v1520
      %v1553 = vadd.f32 %v1484, %v1521
      %v1554 = vadd.f32 %v1485, %v1522
      %v1555 = vadd.f32 %v1486, %v1523
      %v1556 = vadd.f32 %v1487, %v1524
      %v1557 = vadd.f32 %v1488, %v1525
      %v1558 = vadd.f32 %v1489, %v1526
      %v1559 = vadd.f32 %v1490, %v1527
      %v1560 = vadd.f32 %v1491, %v1528
      %v1561 = vadd.f32 %v1492, %v1529
      %v1562 = vadd.f32 %v1493, %v1530
      %v1563 = vadd.f32 %v1494, %v1531
      %v1564 = vadd.f32 %v1495, %v1532
      %v1565 = vadd.f32 %v1496, %v1533
      %v1566 = vadd.f32 %v1497, %v1534
      %v1567 = vadd.f32 %v1498, %v1535
      %v1568 = vadd.f32 %v1499, %v1536
      %v1569 = vadd.f32 %v1500, %v1537
      %v1570 = vadd.f32 %v1501, %v1538
      %v1571 = vadd.f32 %v1502, %v1539
      %v1572 = vadd.f32 %v1503, %v1540
      %v1573 = vadd.f32 %v1504, %v1541
      %v1574 = vadd.f32 %v1505, %v1542
      %v1575 = vadd.f32 %v1506, %v1543
      %v1576 = vadd.f32 %v1507, %v1544
      %v1577 = vadd.f32 %v1508, %v1545
      %v1578 = vadd.f32 %v1509, %v1546
      %v1579 = vadd.f32 %v1510, %v1547
      %v1580 = vadd.f32 %v1511, %v1548
      %v1581 = vld [vmem:[%s175 + $0x7] sm:$0x1]
      %v1582 = vlaneseq
      %v1583 = vshrl.u32 %v1582, 7
      %v1584 = vsub.s32 0, %v1583
      %v1585 = vrot.slane %v1581, %v1584
      %v1586 = vmul.f32 %v360, %v1585
      %v1587 = vmul.f32 %v265, %v1585
      %v1588 = vmul.f32 %v377, %v1585
      %v1589 = vmul.f32 %v361, %v1585
      %v1590 = vmul.f32 %v268, %v1585
      %v1591 = vmul.f32 %v378, %v1585
      %v1592 = vmul.f32 %v362, %v1585
      %v1593 = vmul.f32 %v271, %v1585
      %v1594 = vmul.f32 %v379, %v1585
      %v1595 = vmul.f32 %v363, %v1585
      %v1596 = vmul.f32 %v274, %v1585
      %v1597 = vmul.f32 %v380, %v1585
      %v1598 = vmul.f32 %v364, %v1585
      %v1599 = vmul.f32 %v277, %v1585
      %v1600 = vmul.f32 %v381, %v1585
      %v1601 = vmul.f32 %v365, %v1585
      %v1602 = vmul.f32 %v280, %v1585
      %v1603 = vmul.f32 %v382, %v1585
      %v1604 = vmul.f32 %v366, %v1585
      %v1605 = vmul.f32 %v283, %v1585
      %v1606 = vmul.f32 %v383, %v1585
      %v1607 = vmul.f32 %v367, %v1585
      %v1608 = vmul.f32 %v286, %v1585
      %v1609 = vmul.f32 %v384, %v1585
      %v1610 = vmul.f32 %v368, %v1585
      %v1611 = vmul.f32 %v289, %v1585
      %v1612 = vmul.f32 %v385, %v1585
      %v1613 = vmul.f32 %v369, %v1585
      %v1614 = vmul.f32 %v292, %v1585
      %v1615 = vmul.f32 %v386, %v1585
      %v1616 = vmul.f32 %v370, %v1585
      %v1617 = vmul.f32 %v295, %v1585
      %v1618 = vmul.f32 %v387, %v1585
      %v1619 = vmul.f32 %v371, %v1585
      %v1620 = vmul.f32 %v298, %v1585
      %v1621 = vmul.f32 %v388, %v1585
      %v1622 = vmul.f32 %v372, %v1585
      %v1623 = vmul.f32 %v301, %v1585
      %v1624 = vmul.f32 %v389, %v1585
      %v1625 = vmul.f32 %v373, %v1585
      %v1626 = vmul.f32 %v304, %v1585
      %v1627 = vmul.f32 %v390, %v1585
      %v1628 = vmul.f32 %v374, %v1585
      %v1629 = vmul.f32 %v307, %v1585
      %v1630 = vmul.f32 %v391, %v1585
      %v1631 = vmul.f32 %v358, %v1585
      %v1632 = vmul.f32 %v259, %v1585
      %v1633 = vmul.f32 %v375, %v1585
      %v1682 = vrot.slane %v1586, 1
      %v1683 = vrot.slane %v1587, 1
      %v1684 = vsel %vm562, %v1682, %v1683
      %v1685 = vrot.slane %v1588, 1
      %v1686 = vsel %vm562, %v1683, %v1685
      %v1687 = vrot.slane %v1589, 1
      %v1688 = vrot.slane %v1590, 1
      %v1689 = vsel %vm562, %v1687, %v1688
      %v1690 = vrot.slane %v1591, 1
      %v1691 = vsel %vm562, %v1688, %v1690
      %v1692 = vrot.slane %v1592, 1
      %v1693 = vrot.slane %v1593, 1
      %v1694 = vsel %vm562, %v1692, %v1693
      %v1695 = vrot.slane %v1594, 1
      %v1696 = vsel %vm562, %v1693, %v1695
      %v1697 = vrot.slane %v1595, 1
      %v1698 = vrot.slane %v1596, 1
      %v1699 = vsel %vm562, %v1697, %v1698
      %v1700 = vrot.slane %v1597, 1
      %v1701 = vsel %vm562, %v1698, %v1700
      %v1702 = vrot.slane %v1598, 1
      %v1703 = vrot.slane %v1599, 1
      %v1704 = vsel %vm562, %v1702, %v1703
      %v1705 = vrot.slane %v1600, 1
      %v1706 = vsel %vm562, %v1703, %v1705
      %v1707 = vrot.slane %v1601, 1
      %v1708 = vrot.slane %v1602, 1
      %v1709 = vsel %vm562, %v1707, %v1708
      %v1710 = vrot.slane %v1603, 1
      %v1711 = vsel %vm562, %v1708, %v1710
      %v1712 = vrot.slane %v1604, 1
      %v1713 = vrot.slane %v1605, 1
      %v1714 = vsel %vm562, %v1712, %v1713
      %v1715 = vrot.slane %v1606, 1
      %v1716 = vsel %vm562, %v1713, %v1715
      %v1717 = vrot.slane %v1607, 1
      %v1718 = vrot.slane %v1608, 1
      %v1719 = vsel %vm562, %v1717, %v1718
      %v1720 = vrot.slane %v1609, 1
      %v1721 = vsel %vm562, %v1718, %v1720
      %v1722 = vrot.slane %v1610, 1
      %v1723 = vrot.slane %v1611, 1
      %v1724 = vsel %vm562, %v1722, %v1723
      %v1725 = vrot.slane %v1612, 1
      %v1726 = vsel %vm562, %v1723, %v1725
      %v1727 = vrot.slane %v1613, 1
      %v1728 = vrot.slane %v1614, 1
      %v1729 = vsel %vm562, %v1727, %v1728
      %v1730 = vrot.slane %v1615, 1
      %v1731 = vsel %vm562, %v1728, %v1730
      %v1732 = vrot.slane %v1616, 1
      %v1733 = vrot.slane %v1617, 1
      %v1734 = vsel %vm562, %v1732, %v1733
      %v1735 = vrot.slane %v1618, 1
      %v1736 = vsel %vm562, %v1733, %v1735
      %v1737 = vrot.slane %v1619, 1
      %v1738 = vrot.slane %v1620, 1
      %v1739 = vsel %vm562, %v1737, %v1738
      %v1740 = vrot.slane %v1621, 1
      %v1741 = vsel %vm562, %v1738, %v1740
      %v1742 = vrot.slane %v1622, 1
      %v1743 = vrot.slane %v1623, 1
      %v1744 = vsel %vm562, %v1742, %v1743
      %v1745 = vrot.slane %v1624, 1
      %v1746 = vsel %vm562, %v1743, %v1745
      %v1747 = vrot.slane %v1625, 1
      %v1748 = vrot.slane %v1626, 1
      %v1749 = vsel %vm562, %v1747, %v1748
      %v1750 = vrot.slane %v1627, 1
      %v1751 = vsel %vm562, %v1748, %v1750
      %v1752 = vrot.slane %v1628, 1
      %v1753 = vrot.slane %v1629, 1
      %v1754 = vsel %vm562, %v1752, %v1753
      %v1755 = vrot.slane %v1630, 1
      %v1756 = vsel %vm562, %v1753, %v1755
      %v1757 = vrot.slane %v1631, 1
      %v1758 = vrot.slane %v1632, 1
      %v1759 = vsel %vm562, %v1757, %v1758
      %v1760 = vrot.slane %v1633, 1
      %v1761 = vsel %vm562, %v1758, %v1760
      %v1794 = vadd.f32 %v1549, %v1684
      %v1795 = vadd.f32 %v1550, %v1686
      %v1796 = vadd.f32 %v1551, %v1689
      %v1797 = vadd.f32 %v1552, %v1691
      %v1798 = vadd.f32 %v1553, %v1694
      %v1799 = vadd.f32 %v1554, %v1696
      %v1800 = vadd.f32 %v1555, %v1699
      %v1801 = vadd.f32 %v1556, %v1701
      %v1802 = vadd.f32 %v1557, %v1704
      %v1803 = vadd.f32 %v1558, %v1706
      %v1804 = vadd.f32 %v1559, %v1709
      %v1805 = vadd.f32 %v1560, %v1711
      %v1806 = vadd.f32 %v1561, %v1714
      %v1807 = vadd.f32 %v1562, %v1716
      %v1808 = vadd.f32 %v1563, %v1719
      %v1809 = vadd.f32 %v1564, %v1721
      %v1810 = vadd.f32 %v1565, %v1724
      %v1811 = vadd.f32 %v1566, %v1726
      %v1812 = vadd.f32 %v1567, %v1729
      %v1813 = vadd.f32 %v1568, %v1731
      %v1814 = vadd.f32 %v1569, %v1734
      %v1815 = vadd.f32 %v1570, %v1736
      %v1816 = vadd.f32 %v1571, %v1739
      %v1817 = vadd.f32 %v1572, %v1741
      %v1818 = vadd.f32 %v1573, %v1744
      %v1819 = vadd.f32 %v1574, %v1746
      %v1820 = vadd.f32 %v1575, %v1749
      %v1821 = vadd.f32 %v1576, %v1751
      %v1822 = vadd.f32 %v1577, %v1754
      %v1823 = vadd.f32 %v1578, %v1756
      %v1824 = vadd.f32 %v1579, %v1759
      %v1825 = vadd.f32 %v1580, %v1761
      %v1826 = vld [vmem:[%s175 + $0x8] sm:$0x1]
      %v1827 = vlaneseq
      %v1828 = vshrl.u32 %v1827, 7
      %v1829 = vsub.s32 0, %v1828
      %v1830 = vrot.slane %v1826, %v1829
      %v1831 = vmul.f32 %v360, %v1830
      %v1832 = vmul.f32 %v265, %v1830
      %v1833 = vmul.f32 %v377, %v1830
      %v1834 = vmul.f32 %v361, %v1830
      %v1835 = vmul.f32 %v268, %v1830
      %v1836 = vmul.f32 %v378, %v1830
      %v1837 = vmul.f32 %v362, %v1830
      %v1838 = vmul.f32 %v271, %v1830
      %v1839 = vmul.f32 %v379, %v1830
      %v1840 = vmul.f32 %v363, %v1830
      %v1841 = vmul.f32 %v274, %v1830
      %v1842 = vmul.f32 %v380, %v1830
      %v1843 = vmul.f32 %v364, %v1830
      %v1844 = vmul.f32 %v277, %v1830
      %v1845 = vmul.f32 %v381, %v1830
      %v1846 = vmul.f32 %v365, %v1830
      %v1847 = vmul.f32 %v280, %v1830
      %v1848 = vmul.f32 %v382, %v1830
      %v1849 = vmul.f32 %v366, %v1830
      %v1850 = vmul.f32 %v283, %v1830
      %v1851 = vmul.f32 %v383, %v1830
      %v1852 = vmul.f32 %v367, %v1830
      %v1853 = vmul.f32 %v286, %v1830
      %v1854 = vmul.f32 %v384, %v1830
      %v1855 = vmul.f32 %v368, %v1830
      %v1856 = vmul.f32 %v289, %v1830
      %v1857 = vmul.f32 %v385, %v1830
      %v1858 = vmul.f32 %v369, %v1830
      %v1859 = vmul.f32 %v292, %v1830
      %v1860 = vmul.f32 %v386, %v1830
      %v1861 = vmul.f32 %v370, %v1830
      %v1862 = vmul.f32 %v295, %v1830
      %v1863 = vmul.f32 %v387, %v1830
      %v1864 = vmul.f32 %v371, %v1830
      %v1865 = vmul.f32 %v298, %v1830
      %v1866 = vmul.f32 %v388, %v1830
      %v1867 = vmul.f32 %v372, %v1830
      %v1868 = vmul.f32 %v301, %v1830
      %v1869 = vmul.f32 %v389, %v1830
      %v1870 = vmul.f32 %v373, %v1830
      %v1871 = vmul.f32 %v304, %v1830
      %v1872 = vmul.f32 %v390, %v1830
      %v1873 = vmul.f32 %v374, %v1830
      %v1874 = vmul.f32 %v307, %v1830
      %v1875 = vmul.f32 %v391, %v1830
      %v1876 = vmul.f32 %v358, %v1830
      %v1877 = vmul.f32 %v259, %v1830
      %v1878 = vmul.f32 %v375, %v1830
      %v1927 = vrot.slane %v1831, 2
      %v1928 = vrot.slane %v1832, 2
      %v1929 = vsel %vm808, %v1927, %v1928
      %v1930 = vrot.slane %v1833, 2
      %v1931 = vsel %vm808, %v1928, %v1930
      %v1932 = vrot.slane %v1834, 2
      %v1933 = vrot.slane %v1835, 2
      %v1934 = vsel %vm808, %v1932, %v1933
      %v1935 = vrot.slane %v1836, 2
      %v1936 = vsel %vm808, %v1933, %v1935
      %v1937 = vrot.slane %v1837, 2
      %v1938 = vrot.slane %v1838, 2
      %v1939 = vsel %vm808, %v1937, %v1938
      %v1940 = vrot.slane %v1839, 2
      %v1941 = vsel %vm808, %v1938, %v1940
      %v1942 = vrot.slane %v1840, 2
      %v1943 = vrot.slane %v1841, 2
      %v1944 = vsel %vm808, %v1942, %v1943
      %v1945 = vrot.slane %v1842, 2
      %v1946 = vsel %vm808, %v1943, %v1945
      %v1947 = vrot.slane %v1843, 2
      %v1948 = vrot.slane %v1844, 2
      %v1949 = vsel %vm808, %v1947, %v1948
      %v1950 = vrot.slane %v1845, 2
      %v1951 = vsel %vm808, %v1948, %v1950
      %v1952 = vrot.slane %v1846, 2
      %v1953 = vrot.slane %v1847, 2
      %v1954 = vsel %vm808, %v1952, %v1953
      %v1955 = vrot.slane %v1848, 2
      %v1956 = vsel %vm808, %v1953, %v1955
      %v1957 = vrot.slane %v1849, 2
      %v1958 = vrot.slane %v1850, 2
      %v1959 = vsel %vm808, %v1957, %v1958
      %v1960 = vrot.slane %v1851, 2
      %v1961 = vsel %vm808, %v1958, %v1960
      %v1962 = vrot.slane %v1852, 2
      %v1963 = vrot.slane %v1853, 2
      %v1964 = vsel %vm808, %v1962, %v1963
      %v1965 = vrot.slane %v1854, 2
      %v1966 = vsel %vm808, %v1963, %v1965
      %v1967 = vrot.slane %v1855, 2
      %v1968 = vrot.slane %v1856, 2
      %v1969 = vsel %vm808, %v1967, %v1968
      %v1970 = vrot.slane %v1857, 2
      %v1971 = vsel %vm808, %v1968, %v1970
      %v1972 = vrot.slane %v1858, 2
      %v1973 = vrot.slane %v1859, 2
      %v1974 = vsel %vm808, %v1972, %v1973
      %v1975 = vrot.slane %v1860, 2
      %v1976 = vsel %vm808, %v1973, %v1975
      %v1977 = vrot.slane %v1861, 2
      %v1978 = vrot.slane %v1862, 2
      %v1979 = vsel %vm808, %v1977, %v1978
      %v1980 = vrot.slane %v1863, 2
      %v1981 = vsel %vm808, %v1978, %v1980
      %v1982 = vrot.slane %v1864, 2
      %v1983 = vrot.slane %v1865, 2
      %v1984 = vsel %vm808, %v1982, %v1983
      %v1985 = vrot.slane %v1866, 2
      %v1986 = vsel %vm808, %v1983, %v1985
      %v1987 = vrot.slane %v1867, 2
      %v1988 = vrot.slane %v1868, 2
      %v1989 = vsel %vm808, %v1987, %v1988
      %v1990 = vrot.slane %v1869, 2
      %v1991 = vsel %vm808, %v1988, %v1990
      %v1992 = vrot.slane %v1870, 2
      %v1993 = vrot.slane %v1871, 2
      %v1994 = vsel %vm808, %v1992, %v1993
      %v1995 = vrot.slane %v1872, 2
      %v1996 = vsel %vm808, %v1993, %v1995
      %v1997 = vrot.slane %v1873, 2
      %v1998 = vrot.slane %v1874, 2
      %v1999 = vsel %vm808, %v1997, %v1998
      %v2000 = vrot.slane %v1875, 2
      %v2001 = vsel %vm808, %v1998, %v2000
      %v2002 = vrot.slane %v1876, 2
      %v2003 = vrot.slane %v1877, 2
      %v2004 = vsel %vm808, %v2002, %v2003
      %v2005 = vrot.slane %v1878, 2
      %v2006 = vsel %vm808, %v2003, %v2005
      %v2039 = vadd.f32 %v1794, %v1929
      %v2040 = vadd.f32 %v1795, %v1931
      %v2041 = vadd.f32 %v1796, %v1934
      %v2042 = vadd.f32 %v1797, %v1936
      %v2043 = vadd.f32 %v1798, %v1939
      %v2044 = vadd.f32 %v1799, %v1941
      %v2045 = vadd.f32 %v1800, %v1944
      %v2046 = vadd.f32 %v1801, %v1946
      %v2047 = vadd.f32 %v1802, %v1949
      %v2048 = vadd.f32 %v1803, %v1951
      %v2049 = vadd.f32 %v1804, %v1954
      %v2050 = vadd.f32 %v1805, %v1956
      %v2051 = vadd.f32 %v1806, %v1959
      %v2052 = vadd.f32 %v1807, %v1961
      %v2053 = vadd.f32 %v1808, %v1964
      %v2054 = vadd.f32 %v1809, %v1966
      %v2055 = vadd.f32 %v1810, %v1969
      %v2056 = vadd.f32 %v1811, %v1971
      %v2057 = vadd.f32 %v1812, %v1974
      %v2058 = vadd.f32 %v1813, %v1976
      %v2059 = vadd.f32 %v1814, %v1979
      %v2060 = vadd.f32 %v1815, %v1981
      %v2061 = vadd.f32 %v1816, %v1984
      %v2062 = vadd.f32 %v1817, %v1986
      %v2063 = vadd.f32 %v1818, %v1989
      %v2064 = vadd.f32 %v1819, %v1991
      %v2065 = vadd.f32 %v1820, %v1994
      %v2066 = vadd.f32 %v1821, %v1996
      %v2067 = vadd.f32 %v1822, %v1999
      %v2068 = vadd.f32 %v1823, %v2001
      %v2069 = vadd.f32 %v1824, %v2004
      %v2070 = vadd.f32 %v1825, %v2006
      %v2071 = vld [vmem:[%s175 + $0x9] sm:$0x1]
      %v2072 = vlaneseq
      %v2073 = vshrl.u32 %v2072, 7
      %v2074 = vsub.s32 0, %v2073
      %v2075 = vrot.slane %v2071, %v2074
      %v2076 = vadd.f32 %v2039, %v2075
      %v2077 = vadd.f32 %v2040, %v2075
      %v2078 = vadd.f32 %v2041, %v2075
      %v2079 = vadd.f32 %v2042, %v2075
      %v2080 = vadd.f32 %v2043, %v2075
      %v2081 = vadd.f32 %v2044, %v2075
      %v2082 = vadd.f32 %v2045, %v2075
      %v2083 = vadd.f32 %v2046, %v2075
      %v2084 = vadd.f32 %v2047, %v2075
      %v2085 = vadd.f32 %v2048, %v2075
      %v2086 = vadd.f32 %v2049, %v2075
      %v2087 = vadd.f32 %v2050, %v2075
      %v2088 = vadd.f32 %v2051, %v2075
      %v2089 = vadd.f32 %v2052, %v2075
      %v2090 = vadd.f32 %v2053, %v2075
      %v2091 = vadd.f32 %v2054, %v2075
      %v2092 = vadd.f32 %v2055, %v2075
      %v2093 = vadd.f32 %v2056, %v2075
      %v2094 = vadd.f32 %v2057, %v2075
      %v2095 = vadd.f32 %v2058, %v2075
      %v2096 = vadd.f32 %v2059, %v2075
      %v2097 = vadd.f32 %v2060, %v2075
      %v2098 = vadd.f32 %v2061, %v2075
      %v2099 = vadd.f32 %v2062, %v2075
      %v2100 = vadd.f32 %v2063, %v2075
      %v2101 = vadd.f32 %v2064, %v2075
      %v2102 = vadd.f32 %v2065, %v2075
      %v2103 = vadd.f32 %v2066, %v2075
      %v2104 = vadd.f32 %v2067, %v2075
      %v2105 = vadd.f32 %v2068, %v2075
      %v2106 = vadd.f32 %v2069, %v2075
      %v2107 = vadd.f32 %v2070, %v2075
      %v2108 = vmax.f32 %v192, %v2076
      %v2109 = vmax.f32 %v193, %v2077
      %v2110 = vmax.f32 %v194, %v2078
      %v2111 = vmax.f32 %v195, %v2079
      %v2112 = vmax.f32 %v196, %v2080
      %v2113 = vmax.f32 %v197, %v2081
      %v2114 = vmax.f32 %v198, %v2082
      %v2115 = vmax.f32 %v199, %v2083
      %v2116 = vmax.f32 %v200, %v2084
      %v2117 = vmax.f32 %v201, %v2085
      %v2118 = vmax.f32 %v202, %v2086
      %v2119 = vmax.f32 %v203, %v2087
      %v2120 = vmax.f32 %v204, %v2088
      %v2121 = vmax.f32 %v205, %v2089
      %v2122 = vmax.f32 %v206, %v2090
      %v2123 = vmax.f32 %v207, %v2091
      %v2124 = vmax.f32 %v208, %v2092
      %v2125 = vmax.f32 %v209, %v2093
      %v2126 = vmax.f32 %v210, %v2094
      %v2127 = vmax.f32 %v211, %v2095
      %v2128 = vmax.f32 %v212, %v2096
      %v2129 = vmax.f32 %v213, %v2097
      %v2130 = vmax.f32 %v214, %v2098
      %v2131 = vmax.f32 %v215, %v2099
      %v2132 = vmax.f32 %v216, %v2100
      %v2133 = vmax.f32 %v217, %v2101
      %v2134 = vmax.f32 %v218, %v2102
      %v2135 = vmax.f32 %v219, %v2103
      %v2136 = vmax.f32 %v220, %v2104
      %v2137 = vmax.f32 %v221, %v2105
      %v2138 = vmax.f32 %v222, %v2106
      %v2139 = vmax.f32 %v223, %v2107
      %vm2140 = vcmask 31744
      %2141 = vst.msk [vmem:[%s191] sm:$0xff] %vm2140, %v2108
      %2142 = vst.msk [vmem:[%s191 + $0x8] sm:$0xff] %vm2140, %v2109
      %2143 = vst.msk [vmem:[%s191 + $0x10] sm:$0xff] %vm2140, %v2110
      %2144 = vst.msk [vmem:[%s191 + $0x18] sm:$0xff] %vm2140, %v2111
      %2145 = vst.msk [vmem:[%s191 + $0x20] sm:$0xff] %vm2140, %v2112
      %2146 = vst.msk [vmem:[%s191 + $0x28] sm:$0xff] %vm2140, %v2113
      %2147 = vst.msk [vmem:[%s191 + $0x30] sm:$0xff] %vm2140, %v2114
      %2148 = vst.msk [vmem:[%s191 + $0x38] sm:$0xff] %vm2140, %v2115
      %2149 = vst.msk [vmem:[%s191 + $0x40] sm:$0xff] %vm2140, %v2116
      %2150 = vst.msk [vmem:[%s191 + $0x48] sm:$0xff] %vm2140, %v2117
      %2151 = vst.msk [vmem:[%s191 + $0x50] sm:$0xff] %vm2140, %v2118
      %2152 = vst.msk [vmem:[%s191 + $0x58] sm:$0xff] %vm2140, %v2119
      %2153 = vst.msk [vmem:[%s191 + $0x60] sm:$0xff] %vm2140, %v2120
      %2154 = vst.msk [vmem:[%s191 + $0x68] sm:$0xff] %vm2140, %v2121
      %2155 = vst.msk [vmem:[%s191 + $0x70] sm:$0xff] %vm2140, %v2122
      %2156 = vst.msk [vmem:[%s191 + $0x78] sm:$0xff] %vm2140, %v2123
      %2157 = vst.msk [vmem:[%s191 + $0x80] sm:$0xff] %vm2140, %v2124
      %2158 = vst.msk [vmem:[%s191 + $0x88] sm:$0xff] %vm2140, %v2125
      %2159 = vst.msk [vmem:[%s191 + $0x90] sm:$0xff] %vm2140, %v2126
      %2160 = vst.msk [vmem:[%s191 + $0x98] sm:$0xff] %vm2140, %v2127
      %2161 = vst.msk [vmem:[%s191 + $0xa0] sm:$0xff] %vm2140, %v2128
      %2162 = vst.msk [vmem:[%s191 + $0xa8] sm:$0xff] %vm2140, %v2129
      %2163 = vst.msk [vmem:[%s191 + $0xb0] sm:$0xff] %vm2140, %v2130
      %2164 = vst.msk [vmem:[%s191 + $0xb8] sm:$0xff] %vm2140, %v2131
      %2165 = vst.msk [vmem:[%s191 + $0xc0] sm:$0xff] %vm2140, %v2132
      %2166 = vst.msk [vmem:[%s191 + $0xc8] sm:$0xff] %vm2140, %v2133
      %2167 = vst.msk [vmem:[%s191 + $0xd0] sm:$0xff] %vm2140, %v2134
      %2168 = vst.msk [vmem:[%s191 + $0xd8] sm:$0xff] %vm2140, %v2135
      %2169 = vst.msk [vmem:[%s191 + $0xe0] sm:$0xff] %vm2140, %v2136
      %2170 = vst.msk [vmem:[%s191 + $0xe8] sm:$0xff] %vm2140, %v2137
      %2171 = vst.msk [vmem:[%s191 + $0xf0] sm:$0xff] %vm2140, %v2138
      %2172 = vst.msk [vmem:[%s191 + $0xf8] sm:$0xff] %vm2140, %v2139
      %p2173 = scmp.lt.s32.totalorder %s17, 1
      %s2174 = scalar_select %p2173, %s17, 1
      %p2175 = scmp.lt.s32.totalorder %s18, 0
      %s2176 = scalar_select %p2175, %s18, 0
      %s2177 = smul.addr %s2174, 32
      %s2178 = sadd.s32 %s2176, %s2177
      %s2179 = smul.addr %s2178, 8
      %s2180 = scalar_lea.vmem %s2, %s2179
      // Predicated region
      $region29: #{tpu_custom_call.1} parent=27 // pred_check
        %p2181 = pneg %p99
      $region30: #{tpu_custom_call.1} parent=27 // pred_check_branch
        %2183 = sbr.rel (%p2181) target = $region32
      $region31: #{tpu_custom_call.1} parent=27 // pred_region
        _
      $region32: #{tpu_custom_call.1} parent=27 // pred_fallthru
        _
    $region28: #{tpu_custom_call.1} parent=5 // pred_fallthru
      _
    %p2184 = scmp.le.s32.totalorder 2, %s8
    // Predicated region
    $region33: #{tpu_custom_call.1} parent=5 // pred_check
      %p2185 = pneg %p2184
    $region34: #{tpu_custom_call.1} parent=5 // pred_check_branch
      %2187 = sbr.rel (%p2185) target = $region36
    $region35: #{tpu_custom_call.1} parent=5 // pred_region
      %s2188 = ssub.s32 %s8, 2
      // Predicated region
      $region37: #{tpu_custom_call.1} parent=35 // pred_check
        %p2189 = pneg %p105
      $region38: #{tpu_custom_call.1} parent=35 // pred_check_branch
        %2191 = sbr.rel (%p2189) target = $region40
      $region39: #{tpu_custom_call.1} parent=35 // pred_region
        %p2192 = scmp.lt.s32.totalorder %s19, 1
        %s2193 = scalar_select %p2192, %s19, 1
        %p2194 = scmp.lt.s32.totalorder %s20, 0
        %s2195 = scalar_select %p2194, %s20, 0
        %s2196 = smul.addr %s2193, 32
        %s2197 = sadd.s32 %s2195, %s2196
        %s2198 = smul.addr %s2197, 8
        %s2199 = scalar_lea.vmem %s2, %s2198
      $region40: #{tpu_custom_call.1} parent=35 // pred_fallthru
        _
    $region36: #{tpu_custom_call.1} parent=5 // pred_fallthru
      _
  $region6: #{tpu_custom_call.1} parent=0 // loop_footer
    %s12 = sadd.s32 1, %s8
  $region7: #{tpu_custom_call.1} parent=0 // loop_footer_branch
    %7 = sbr.rel target = $region3
  $region8: #{tpu_custom_call.1} parent=0 // loop_exit
    _

</llo_original>
